<compile_context>
chip_gen: v6e
topology: v6e:2x2x1
jax: 0.10.0
libtpu: 0.0.40
codegen_flags: <defaults>
</compile_context>

<pallas_src>
import jax
import jax.numpy as jnp
from jax.experimental import pallas as pl
from jax.experimental.pallas import tpu as pltpu

FC1_DIMS = 1024
FC2_DIMS = 512
LANE = 128  # pad action_dim outputs to a lane-dense width


def _round_up(n, m):
    return ((n + m - 1) // m) * m


def _pick_batch_tile(B):
    """Choose (TB, B_pad) for the batch axis.

    Small batches: a single tile, rounded to 16 rows (bf16 packs 16 rows per
    sublane-packed vreg). Large batches: the biggest of {1024, 512, 256} that
    still yields >= 2 grid steps, so the "parallel" batch axis actually shards
    across both TensorCores on v7x. If no candidate gives >= 2 steps
    (e.g. B == 256 exactly), split the batch into two half tiles.
    """
    if B < 256:
        TB = _round_up(B, 16)
        return TB, TB
    for TB in (1024, 512, 256):
        B_pad = _round_up(B, TB)
        if B_pad // TB >= 2:
            return TB, B_pad
    TB = _round_up((B + 1) // 2, 128)
    return TB, _round_up(B, TB)


def actor_kernel(x_ref, w1_ref, b1_ref, w2_ref, b2_ref, w3_ref, b3_ref, mu_ref):
    # One batch tile per grid step; weights stay VMEM-resident (constant
    # index_map, single-buffered). f32 x is cast to bf16 on the VPU in-kernel;
    # all matmuls use bf16 MXU inputs with f32 accumulation; ReLU on the VPU.
    x = x_ref[...].astype(jnp.bfloat16)
    h1 = jnp.dot(x, w1_ref[...], preferred_element_type=jnp.float32) + b1_ref[...]
    h1 = jnp.maximum(h1, 0.0).astype(jnp.bfloat16)
    h2 = jnp.dot(h1, w2_ref[...], preferred_element_type=jnp.float32) + b2_ref[...]
    h2 = jnp.maximum(h2, 0.0).astype(jnp.bfloat16)
    mu = jnp.dot(h2, w3_ref[...], preferred_element_type=jnp.float32) + b3_ref[...]
    mu_ref[...] = mu  # A padded to 128 -> lane-dense, unmasked vector stores


def _resident(shape):
    # Constant-index weight/bias block: identical across all grid steps, so a
    # single buffer suffices (no double-buffer VMEM or pipelining bookkeeping).
    return pl.BlockSpec(shape, lambda i: (0, 0), pipeline_mode=pl.Buffered(1))


@jax.jit
def actor_forward(x, params):
    """Returns (mu, std) parameterizing Normal(mu, std), like Actor.forward.

    std = exp(log_std) is returned with shape (1, action_dim); Normal(mu, std)
    broadcasts it against mu, so we avoid writing a (B, A) duplicate to HBM.
    """
    # TODO(synk): for B <~ 64 the call is bound by the ~1.2 MB bf16 weight
    # fetch (w2 alone is 1 MB), not by anything in the kernel body; amortize by
    # batching actor calls or keeping weights VMEM-resident across calls.
    w1, b1, w2, b2, w3p, b3p, log_std = params
    B, S = x.shape
    A = log_std.shape[1]          # true action_dim
    A_pad = w3p.shape[1]          # lane-padded action_dim (multiple of 128)

    TB, B_pad = _pick_batch_tile(B)
    if B_pad != B:
        x = jnp.pad(x, ((0, B_pad - B), (0, 0)))

    flops = 2 * B_pad * (S * FC1_DIMS + FC1_DIMS * FC2_DIMS + FC2_DIMS * A_pad)
    bytes_accessed = (
        B_pad * S * 4                       # x (f32, cast in-kernel)
        + S * FC1_DIMS * 2                  # w1 (bf16)
        + FC1_DIMS * FC2_DIMS * 2           # w2 (bf16)
        + FC2_DIMS * A_pad * 2              # w3 (bf16)
        + (FC1_DIMS + FC2_DIMS + A_pad) * 4 # biases (f32)
        + B_pad * A_pad * 4                 # mu (f32)
    )

    mu_pad = pl.pallas_call(
        actor_kernel,
        out_shape=jax.ShapeDtypeStruct((B_pad, A_pad), jnp.float32),
        grid=(B_pad // TB,),
        in_specs=[
            pl.BlockSpec((TB, S), lambda i: (i, 0)),   # x: tiled over batch
            _resident((S, FC1_DIMS)),                  # weights/biases: resident
            _resident((1, FC1_DIMS)),
            _resident((FC1_DIMS, FC2_DIMS)),
            _resident((1, FC2_DIMS)),
            _resident((FC2_DIMS, A_pad)),
            _resident((1, A_pad)),
        ],
        out_specs=pl.BlockSpec((TB, A_pad), lambda i: (i, 0)),
        compiler_params=pltpu.CompilerParams(
            dimension_semantics=("parallel",),         # v7x: shard batch over 2 TCs
            vmem_limit_bytes=32 * 1024 * 1024,         # v5e default is 16 MiB
        ),
        cost_estimate=pl.CostEstimate(
            flops=flops, transcendentals=0, bytes_accessed=bytes_accessed),
    )(x, w1, b1, w2, b2, w3p, b3p)

    mu = mu_pad[:B, :A]
    std = jnp.exp(log_std)                  # (1, A); Normal broadcasts vs. mu
    return mu, std


def init_params(key, state_dim, action_dim, std_init=0.01):
    """Torch-Linear-style init, stored in kernel-friendly layout:
       weights (in, out) in bf16; w3/b3 lane-padded to 128 cols; biases/log_std f32.
       Matches torch: log_std = ones(1, action_dim) * std_init (i.e. std ~= e^0.01)."""
    ks = jax.random.split(key, 6)

    def linear(kw, kb, fan_in, fan_out):
        bound = 1.0 / jnp.sqrt(jnp.float32(fan_in))
        w = jax.random.uniform(kw, (fan_in, fan_out), jnp.float32, -bound, bound)
        b = jax.random.uniform(kb, (1, fan_out), jnp.float32, -bound, bound)
        return w, b

    w1, b1 = linear(ks[0], ks[1], state_dim, FC1_DIMS)
    w2, b2 = linear(ks[2], ks[3], FC1_DIMS, FC2_DIMS)
    w3, b3 = linear(ks[4], ks[5], FC2_DIMS, action_dim)

    a_pad = _round_up(action_dim, LANE)
    w3p = jnp.zeros((FC2_DIMS, a_pad), jnp.float32).at[:, :action_dim].set(w3)
    b3p = jnp.zeros((1, a_pad), jnp.float32).at[:, :action_dim].set(b3)

    log_std = jnp.full((1, action_dim), std_init, dtype=jnp.float32)
    return (w1.astype(jnp.bfloat16), b1,
            w2.astype(jnp.bfloat16), b2,
            w3p.astype(jnp.bfloat16), b3p,
            log_std)


def actor_forward_ref(x, params):
    """Pure-JAX reference using the same bf16 weights / f32 accumulation."""
    w1, b1, w2, b2, w3p, b3p, log_std = params
    A = log_std.shape[1]
    xb = x.astype(jnp.bfloat16)
    h1 = jnp.maximum(
        jnp.dot(xb, w1, preferred_element_type=jnp.float32) + b1, 0.0
    ).astype(jnp.bfloat16)
    h2 = jnp.maximum(
        jnp.dot(h1, w2, preferred_element_type=jnp.float32) + b2, 0.0
    ).astype(jnp.bfloat16)
    mu = (jnp.dot(h2, w3p, preferred_element_type=jnp.float32) + b3p)[:, :A]
    std = jnp.exp(log_std)
    return mu, std


if __name__ == "__main__":
    key = jax.random.PRNGKey(0)
    k_param, k_x = jax.random.split(key)

    batch = 2
    state_dim = 8     # state_shape = (8,)
    action_dim = 4    # action_shape = (4,)

    params = init_params(k_param, state_dim, action_dim)
    x = jax.random.normal(k_x, (batch, state_dim), dtype=jnp.float32)

    mu, std = actor_forward(x, params)
    jax.block_until_ready((mu, std))

    mu_ref, std_ref = actor_forward_ref(x, params)
    assert mu.shape == (batch, action_dim)
    assert std.shape == (1, action_dim)          # Normal(mu, std) broadcasts
    assert jnp.allclose(mu, mu_ref, atol=2e-3, rtol=2e-3)
    assert jnp.allclose(std, std_ref, atol=1e-6, rtol=1e-6)

    print("KERNEL_OK")
</pallas_src>

<mosaic_0001>
module attributes {stable_mosaic.version = 11 : i64} {
  func.func @actor_kernel(%arg0: i32, %arg1: memref<16x8xf32, #tpu.memory_space<vmem>>, %arg2: memref<8x1024xbf16, #tpu.memory_space<vmem>>, %arg3: memref<1x1024xf32, #tpu.memory_space<vmem>>, %arg4: memref<1024x512xbf16, #tpu.memory_space<vmem>>, %arg5: memref<1x512xf32, #tpu.memory_space<vmem>>, %arg6: memref<512x128xbf16, #tpu.memory_space<vmem>>, %arg7: memref<1x128xf32, #tpu.memory_space<vmem>>, %arg8: memref<16x128xf32, #tpu.memory_space<vmem>>) attributes {dimension_semantics = [#tpu.dimension_semantics<parallel>], iteration_bounds = array<i64: 1>, scalar_prefetch = 0 : i64, scratch_operands = 0 : i64, tpu.core_type = #tpu.core_type<tc>, window_params = [{transform_indices = @transform_0, window_bounds = array<i64: 16, 8>}, {pipeline_mode = #tpu.pipeline_mode<synchronous>, transform_indices = @transform_1, window_bounds = array<i64: 8, 1024>}, {pipeline_mode = #tpu.pipeline_mode<synchronous>, transform_indices = @transform_2, window_bounds = array<i64: 1, 1024>}, {pipeline_mode = #tpu.pipeline_mode<synchronous>, transform_indices = @transform_3, window_bounds = array<i64: 1024, 512>}, {pipeline_mode = #tpu.pipeline_mode<synchronous>, transform_indices = @transform_4, window_bounds = array<i64: 1, 512>}, {pipeline_mode = #tpu.pipeline_mode<synchronous>, transform_indices = @transform_5, window_bounds = array<i64: 512, 128>}, {pipeline_mode = #tpu.pipeline_mode<synchronous>, transform_indices = @transform_6, window_bounds = array<i64: 1, 128>}, {transform_indices = @transform_7, window_bounds = array<i64: 16, 128>}]} {
    %c0 = arith.constant 0 : index
    %c0_0 = arith.constant 0 : index
    %0 = vector.load %arg1[%c0, %c0_0] : memref<16x8xf32, #tpu.memory_space<vmem>>, vector<16x8xf32>
    %1 = arith.truncf %0 : vector<16x8xf32> to vector<16x8xbf16>
    %c0_1 = arith.constant 0 : index
    %c0_2 = arith.constant 0 : index
    %2 = vector.load %arg2[%c0_1, %c0_2] : memref<8x1024xbf16, #tpu.memory_space<vmem>>, vector<8x1024xbf16>
    %cst = arith.constant dense<0.000000e+00> : vector<16x1024xf32>
    %3 = tpu.matmul %1, %2, %cst {dimension_numbers = #tpu.dot_dimension_numbers<[1], [0], [0], [1], [0, 0, 1, 1], [], []>} : vector<16x8xbf16>, vector<8x1024xbf16>, vector<16x1024xf32> -> vector<16x1024xf32>
    %c0_3 = arith.constant 0 : index
    %c0_4 = arith.constant 0 : index
    %4 = vector.load %arg3[%c0_3, %c0_4] : memref<1x1024xf32, #tpu.memory_space<vmem>>, vector<1x1024xf32>
    %5 = vector.broadcast %4 : vector<1x1024xf32> to vector<16x1024xf32>
    %6 = arith.addf %3, %5 : vector<16x1024xf32>
    %cst_5 = arith.constant 0.000000e+00 : f32
    %7 = vector.broadcast %cst_5 : f32 to vector<16x1024xf32>
    %8 = arith.maximumf %6, %7 : vector<16x1024xf32>
    %9 = arith.truncf %8 : vector<16x1024xf32> to vector<16x1024xbf16>
    %c0_6 = arith.constant 0 : index
    %c0_7 = arith.constant 0 : index
    %10 = vector.load %arg4[%c0_6, %c0_7] : memref<1024x512xbf16, #tpu.memory_space<vmem>>, vector<1024x512xbf16>
    %cst_8 = arith.constant dense<0.000000e+00> : vector<16x512xf32>
    %11 = tpu.matmul %9, %10, %cst_8 {dimension_numbers = #tpu.dot_dimension_numbers<[1], [0], [0], [1], [0, 0, 1, 1], [], []>} : vector<16x1024xbf16>, vector<1024x512xbf16>, vector<16x512xf32> -> vector<16x512xf32>
    %c0_9 = arith.constant 0 : index
    %c0_10 = arith.constant 0 : index
    %12 = vector.load %arg5[%c0_9, %c0_10] : memref<1x512xf32, #tpu.memory_space<vmem>>, vector<1x512xf32>
    %13 = vector.broadcast %12 : vector<1x512xf32> to vector<16x512xf32>
    %14 = arith.addf %11, %13 : vector<16x512xf32>
    %cst_11 = arith.constant 0.000000e+00 : f32
    %15 = vector.broadcast %cst_11 : f32 to vector<16x512xf32>
    %16 = arith.maximumf %14, %15 : vector<16x512xf32>
    %17 = arith.truncf %16 : vector<16x512xf32> to vector<16x512xbf16>
    %c0_12 = arith.constant 0 : index
    %c0_13 = arith.constant 0 : index
    %18 = vector.load %arg6[%c0_12, %c0_13] : memref<512x128xbf16, #tpu.memory_space<vmem>>, vector<512x128xbf16>
    %cst_14 = arith.constant dense<0.000000e+00> : vector<16x128xf32>
    %19 = tpu.matmul %17, %18, %cst_14 {dimension_numbers = #tpu.dot_dimension_numbers<[1], [0], [0], [1], [0, 0, 1, 1], [], []>} : vector<16x512xbf16>, vector<512x128xbf16>, vector<16x128xf32> -> vector<16x128xf32>
    %c0_15 = arith.constant 0 : index
    %c0_16 = arith.constant 0 : index
    %20 = vector.load %arg7[%c0_15, %c0_16] : memref<1x128xf32, #tpu.memory_space<vmem>>, vector<1x128xf32>
    %21 = vector.broadcast %20 : vector<1x128xf32> to vector<16x128xf32>
    %22 = arith.addf %19, %21 : vector<16x128xf32>
    %c0_17 = arith.constant 0 : index
    %c0_18 = arith.constant 0 : index
    %23 = vector.load %arg8[%c0_17, %c0_18] : memref<16x128xf32, #tpu.memory_space<vmem>>, vector<16x128xf32>
    tpu.vector_store %arg8[%c0_17, %c0_18], %22 {strides = array<i32>} : memref<16x128xf32, #tpu.memory_space<vmem>>, vector<16x128xf32>,
    return
  }
  func.func @transform_0(%arg0: i32) -> (i32, i32) {
    %c0_i32 = arith.constant 0 : i32
    %c0_i32_0 = arith.constant 0 : i32
    return %arg0, %c0_i32 : i32, i32
  }
  func.func @transform_1(%arg0: i32) -> (i32, i32) {
    %c0_i32 = arith.constant 0 : i32
    %c0_i32_0 = arith.constant 0 : i32
    %c0_i32_1 = arith.constant 0 : i32
    return %c0_i32, %c0_i32_0 : i32, i32
  }
  func.func @transform_2(%arg0: i32) -> (i32, i32) {
    %c0_i32 = arith.constant 0 : i32
    %c0_i32_0 = arith.constant 0 : i32
    %c0_i32_1 = arith.constant 0 : i32
    return %c0_i32, %c0_i32_0 : i32, i32
  }
  func.func @transform_3(%arg0: i32) -> (i32, i32) {
    %c0_i32 = arith.constant 0 : i32
    %c0_i32_0 = arith.constant 0 : i32
    %c0_i32_1 = arith.constant 0 : i32
    return %c0_i32, %c0_i32_0 : i32, i32
  }
  func.func @transform_4(%arg0: i32) -> (i32, i32) {
    %c0_i32 = arith.constant 0 : i32
    %c0_i32_0 = arith.constant 0 : i32
    %c0_i32_1 = arith.constant 0 : i32
    return %c0_i32, %c0_i32_0 : i32, i32
  }
  func.func @transform_5(%arg0: i32) -> (i32, i32) {
    %c0_i32 = arith.constant 0 : i32
    %c0_i32_0 = arith.constant 0 : i32
    %c0_i32_1 = arith.constant 0 : i32
    return %c0_i32, %c0_i32_0 : i32, i32
  }
  func.func @transform_6(%arg0: i32) -> (i32, i32) {
    %c0_i32 = arith.constant 0 : i32
    %c0_i32_0 = arith.constant 0 : i32
    %c0_i32_1 = arith.constant 0 : i32
    return %c0_i32, %c0_i32_0 : i32, i32
  }
  func.func @transform_7(%arg0: i32) -> (i32, i32) {
    %c0_i32 = arith.constant 0 : i32
    %c0_i32_0 = arith.constant 0 : i32
    return %arg0, %c0_i32 : i32, i32
  }
}

</mosaic_0001>

<llo_original>
// kernel: actor_forward.1
$region0: #{actor_forward.1}
  #allocation0 [shape = 'u32[]', space=smem, size = 0x4, offset = 0x4, fixed_abs, tag = 'smem constant byte address 0x4 - core index']
  #allocation1 [shape = 'u32[144,128]{1,0:T(1,128)}', space=vmem, size = 0x12000, scoped, tag = 'internal scratch']
  %s0 = inlined_call_operand.vmem [shape: f32[16,8], index: 0, kind: input, shape index: {}]
  %s1 = inlined_call_operand.hbm [shape: bf16[8,1024], index: 1, kind: input, shape index: {}]
  %s2 = inlined_call_operand.vmem [shape: f32[1,1024], index: 2, kind: input, shape index: {}]
  %s3 = inlined_call_operand.hbm [shape: bf16[1024,512], index: 3, kind: input, shape index: {}]
  %s4 = inlined_call_operand.vmem [shape: f32[1,512], index: 4, kind: input, shape index: {}]
  %s5 = inlined_call_operand.hbm [shape: bf16[512,128], index: 5, kind: input, shape index: {}]
  %s6 = inlined_call_operand.vmem [shape: f32[1,128], index: 6, kind: input, shape index: {}]
  %s7 = inlined_call_operand.vmem [shape: f32[16,128], index: 7, kind: output, shape index: {}]
  %s8 = sld [smem:[#allocation0]]
  $region50: #{actor_forward.1} parent=0
    _
  %s10 = ssub.s32 1, %s8
  %s11 = scalar_select 0, %s10, %s8
  $region1: #{actor_forward.1} parent=0
    #allocation2 [shape = 'u8[16384]{0}', space=vmem, size = 0x4000, scoped, tag = 'input window, operand 1, single buffered']
    #allocation3 [shape = 's32[1]{0}', space=sflag, size = 0x4, scoped, tag = 'scoped memory for actor_forward.1']
    #allocation4 [shape = 'u8[1048576]{0}', space=vmem, size = 0x100000, scoped, tag = 'input window, operand 3, single buffered']
    #allocation5 [shape = 's32[1]{0}', space=sflag, size = 0x4, scoped, tag = 'scoped memory for actor_forward.1']
    #allocation6 [shape = 'u8[131072]{0}', space=vmem, size = 0x20000, scoped, tag = 'input window, operand 5, single buffered']
    %12 = vsyncpa [#allocation3], 0
    %13 = vsyncpa [#allocation5], 0
    // Predicated region
    $region2: #{actor_forward.1} parent=1 // pred_check
      _
    $region3: #{actor_forward.1} parent=1 // pred_check_branch
      %15 = sbr.rel (0) target = $region5
    $region4: #{actor_forward.1} parent=1 // pred_region
      _
    $region5: #{actor_forward.1} parent=1 // pred_fallthru
      _
    // Predicated region
    $region6: #{actor_forward.1} parent=1 // pred_check
      _
    $region7: #{actor_forward.1} parent=1 // pred_check_branch
      %17 = sbr.rel (0) target = $region9
    $region8: #{actor_forward.1} parent=1 // pred_region
      %s19 = ssub.s32 512, 512
      %20 = vsyncadd [#allocation3], %s19
      %s22 = sshll.u32 [#allocation2], 4
      %s23 = int_to_ptr.vmem [resolvable:$true] %s22
      %25 = dma.hbm_to_vmem [thread:$0]  %s1, 512, %s23, [#allocation3]
    $region9: #{actor_forward.1} parent=1 // pred_fallthru
      _
    // Predicated region
    $region10: #{actor_forward.1} parent=1 // pred_check
      _
    $region11: #{actor_forward.1} parent=1 // pred_check_branch
      %27 = sbr.rel (0) target = $region13
    $region12: #{actor_forward.1} parent=1 // pred_region
      _
    $region13: #{actor_forward.1} parent=1 // pred_fallthru
      _
    // Predicated region
    $region14: #{actor_forward.1} parent=1 // pred_check
      _
    $region15: #{actor_forward.1} parent=1 // pred_check_branch
      %29 = sbr.rel (0) target = $region17
    $region16: #{actor_forward.1} parent=1 // pred_region
      %s31 = ssub.s32 32768, 32768
      %32 = vsyncadd [#allocation5], %s31
      %s33 = sshll.u32 [#allocation4], 4
      %s34 = int_to_ptr.vmem [resolvable:$true] %s33
      %39 = dma.hbm_to_vmem [thread:$0]  %s3, 32768, %s34, [#allocation5], 256, 256, 16
    $region17: #{actor_forward.1} parent=1 // pred_fallthru
      _
    // Predicated region
    $region18: #{actor_forward.1} parent=1 // pred_check
      _
    $region19: #{actor_forward.1} parent=1 // pred_check_branch
      %41 = sbr.rel (0) target = $region21
    $region20: #{actor_forward.1} parent=1 // pred_region
      _
    $region21: #{actor_forward.1} parent=1 // pred_fallthru
      _
    // Predicated region
    $region22: #{actor_forward.1} parent=1 // pred_check
      _
    $region23: #{actor_forward.1} parent=1 // pred_check_branch
      %43 = sbr.rel (0) target = $region25
    $region24: #{actor_forward.1} parent=1 // pred_region
      %s45 = ssub.s32 4096, 4096
      %46 = vsyncadd [#allocation5], %s45
      %s47 = sshll.u32 [#allocation6], 4
      %s48 = int_to_ptr.vmem [resolvable:$true] %s47
      %53 = dma.hbm_to_vmem [thread:$0]  %s5, 4096, %s48, [#allocation5], 64, 64, 4
    $region25: #{actor_forward.1} parent=1 // pred_fallthru
      _
    // Predicated region
    $region26: #{actor_forward.1} parent=1 // pred_check
      _
    $region27: #{actor_forward.1} parent=1 // pred_check_branch
      %55 = sbr.rel (0) target = $region29
    $region28: #{actor_forward.1} parent=1 // pred_region
      _
    $region29: #{actor_forward.1} parent=1 // pred_fallthru
      _
    // Predicated region
    $region30: #{actor_forward.1} parent=1 // pred_check
      _
    $region31: #{actor_forward.1} parent=1 // pred_check_branch
      %57 = sbr.rel (0) target = $region33
    $region32: #{actor_forward.1} parent=1 // pred_region
      %58 = dma.done [#allocation3], 512
    $region33: #{actor_forward.1} parent=1 // pred_fallthru
      _
    // Predicated region
    $region34: #{actor_forward.1} parent=1 // pred_check
      _
    $region35: #{actor_forward.1} parent=1 // pred_check_branch
      %60 = sbr.rel (0) target = $region37
    $region36: #{actor_forward.1} parent=1 // pred_region
      %61 = dma.done [#allocation5], 32768
    $region37: #{actor_forward.1} parent=1 // pred_fallthru
      _
    // Predicated region
    $region38: #{actor_forward.1} parent=1 // pred_check
      _
    $region39: #{actor_forward.1} parent=1 // pred_check_branch
      %63 = sbr.rel (0) target = $region41
    $region40: #{actor_forward.1} parent=1 // pred_region
      %64 = dma.done [#allocation5], 4096
    $region41: #{actor_forward.1} parent=1 // pred_fallthru
      _
    %v66 = vld [vmem:[%s0] sm:$0xff]
    %v67 = vld [vmem:[%s0 + $0x8] sm:$0xff]
    %v68 = vpack.c.bf16 %v67, %v66
    %v69 = vld [vmem:[#allocation2] sm:$0xff]
    %v70 = vld [vmem:[#allocation2 + $0x8] sm:$0xff]
    %v71 = vld [vmem:[#allocation2 + $0x10] sm:$0xff]
    %v72 = vld [vmem:[#allocation2 + $0x18] sm:$0xff]
    %v73 = vld [vmem:[%s2] sm:$0xff]
    %v75 = vlaneseq
    %v76 = vshrl.u32 %v75, 7
    %v77 = vsub.s32 0, %v76
    %v78 = vrot.slane %v73, %v77
    %v79 = vlaneseq
    %v80 = vshrl.u32 %v79, 7
    %v81 = vsub.s32 1, %v80
    %v82 = vrot.slane %v73, %v81
    %v83 = vlaneseq
    %v84 = vshrl.u32 %v83, 7
    %v85 = vsub.s32 2, %v84
    %v86 = vrot.slane %v73, %v85
    %v87 = vlaneseq
    %v88 = vshrl.u32 %v87, 7
    %v89 = vsub.s32 3, %v88
    %v90 = vrot.slane %v73, %v89
    %v91 = vlaneseq
    %v92 = vshrl.u32 %v91, 7
    %v93 = vsub.s32 4, %v92
    %v94 = vrot.slane %v73, %v93
    %v95 = vlaneseq
    %v96 = vshrl.u32 %v95, 7
    %v97 = vsub.s32 5, %v96
    %v98 = vrot.slane %v73, %v97
    %v99 = vlaneseq
    %v100 = vshrl.u32 %v99, 7
    %v101 = vsub.s32 6, %v100
    %v102 = vrot.slane %v73, %v101
    %v103 = vlaneseq
    %v104 = vshrl.u32 %v103, 7
    %v105 = vsub.s32 7, %v104
    %v106 = vrot.slane %v73, %v105
    %v119 = vunpack.c.l.b16 %v69
    %v120 = vunpack.c.h.b16 %v69
    %v121 = vunpack.c.l.b16 %v70
    %v122 = vunpack.c.h.b16 %v70
    %v123 = vunpack.c.l.b16 %v71
    %v124 = vunpack.c.h.b16 %v71
    %v125 = vunpack.c.l.b16 %v72
    %v126 = vunpack.c.h.b16 %v72
    %v127 = vpack.c.b16 %v119, %v119
    %v128 = vpack.c.b16 %v120, %v120
    %v129 = vpack.c.b16 %v121, %v121
    %v130 = vpack.c.b16 %v122, %v122
    %v131 = vpack.c.b16 %v123, %v123
    %v132 = vpack.c.b16 %v124, %v124
    %v133 = vpack.c.b16 %v125, %v125
    %v134 = vpack.c.b16 %v126, %v126
    %vm135 = vcmask 64512
    %v137 = vsel %vm135, %v68, 0
    %vm139 = vcmask 1043456
    %v141 = vsel %vm139, %v127, 0
    %v144 = vsel %vm139, %v128, 0
    %v147 = vsel %vm139, %v129, 0
    %v150 = vsel %vm139, %v130, 0
    %v153 = vsel %vm139, %v131, 0
    %v156 = vsel %vm139, %v132, 0
    %v159 = vsel %vm139, %v133, 0
    %v162 = vsel %vm139, %v134, 0
    %164 = vmatprep.subr.bf16.mxu0 0
    %165 = vmatpush1.bf16.msra.mxu0 0
    %166 = vmatprep.subr.bf16.mxu0 0
    %167 = vmatpush1.bf16.msra.mxu0 0
    %168 = vmatprep.subr.bf16.mxu0 0
    %169 = vmatpush1.bf16.msra.mxu0 0
    %170 = vmatprep.subr.bf16.mxu0 0
    %171 = vmatpush1.bf16.msra.mxu0 0
    %172 = vmatprep.subr.bf16.mxu0 0
    %173 = vmatpush1.bf16.msra.mxu0 0
    %174 = vmatprep.subr.bf16.mxu0 0
    %175 = vmatpush1.bf16.msra.mxu0 0
    %176 = vmatprep.subr.bf16.mxu0 0
    %177 = vmatpush1.bf16.msra.mxu0 0
    %178 = vmatprep.subr.bf16.mxu0 %v144
    %179 = vmatpush1.bf16.msra.mxu0 %v141
    %180 = vmatprep.subr.bf16.mxu0 0
    %181 = vmatpush2.bf16.msra.mxu0 0
    %182 = vmatprep.subr.bf16.mxu0 0
    %183 = vmatpush2.bf16.msra.mxu0 0
    %184 = vmatprep.subr.bf16.mxu0 0
    %185 = vmatpush2.bf16.msra.mxu0 0
    %186 = vmatprep.subr.bf16.mxu0 0
    %187 = vmatpush2.bf16.msra.mxu0 0
    %188 = vmatprep.subr.bf16.mxu0 0
    %189 = vmatpush2.bf16.msra.mxu0 0
    %190 = vmatprep.subr.bf16.mxu0 0
    %191 = vmatpush2.bf16.msra.mxu0 0
    %192 = vmatprep.subr.bf16.mxu0 0
    %193 = vmatpush2.bf16.msra.mxu0 0
    %194 = vmatprep.subr.bf16.mxu0 0
    %195 = vmatpush2.bf16.msra.mxu0 0
    %196 = vmatprep.mubr.bf16.mxu0 0
    %197 = vmatmul.mubr.bf16.gmra.mxu0 %v137
    %v198 = vpop.f32.mrf.mxu0
    %v199 = vadd.f32 %v78, %v198
    %v200 = vpop.f32.mrf.mxu0
    %v201 = vadd.f32 %v82, %v200
    %v202 = vpop.f32.mrf.mxu0
    %v203 = vadd.f32 %v78, %v202
    %v204 = vpop.f32.mrf.mxu0
    %v205 = vadd.f32 %v82, %v204
    %206 = vdwg.mxu0
    %207 = vmatprep.subr.bf16.mxu0 0
    %208 = vmatpush1.bf16.msra.mxu0 0
    %209 = vmatprep.subr.bf16.mxu0 0
    %210 = vmatpush1.bf16.msra.mxu0 0
    %211 = vmatprep.subr.bf16.mxu0 0
    %212 = vmatpush1.bf16.msra.mxu0 0
    %213 = vmatprep.subr.bf16.mxu0 0
    %214 = vmatpush1.bf16.msra.mxu0 0
    %215 = vmatprep.subr.bf16.mxu0 0
    %216 = vmatpush1.bf16.msra.mxu0 0
    %217 = vmatprep.subr.bf16.mxu0 0
    %218 = vmatpush1.bf16.msra.mxu0 0
    %219 = vmatprep.subr.bf16.mxu0 0
    %220 = vmatpush1.bf16.msra.mxu0 0
    %221 = vmatprep.subr.bf16.mxu0 %v150
    %222 = vmatpush1.bf16.msra.mxu0 %v147
    %223 = vmatprep.subr.bf16.mxu0 0
    %224 = vmatpush2.bf16.msra.mxu0 0
    %225 = vmatprep.subr.bf16.mxu0 0
    %226 = vmatpush2.bf16.msra.mxu0 0
    %227 = vmatprep.subr.bf16.mxu0 0
    %228 = vmatpush2.bf16.msra.mxu0 0
    %229 = vmatprep.subr.bf16.mxu0 0
    %230 = vmatpush2.bf16.msra.mxu0 0
    %231 = vmatprep.subr.bf16.mxu0 0
    %232 = vmatpush2.bf16.msra.mxu0 0
    %233 = vmatprep.subr.bf16.mxu0 0
    %234 = vmatpush2.bf16.msra.mxu0 0
    %235 = vmatprep.subr.bf16.mxu0 0
    %236 = vmatpush2.bf16.msra.mxu0 0
    %237 = vmatprep.subr.bf16.mxu0 0
    %238 = vmatpush2.bf16.msra.mxu0 0
    %239 = vmatprep.mubr.bf16.mxu0 0
    %240 = vmatmul.mubr.bf16.gmra.mxu0 %v137
    %v241 = vpop.f32.mrf.mxu0
    %v242 = vadd.f32 %v86, %v241
    %v243 = vpop.f32.mrf.mxu0
    %v244 = vadd.f32 %v90, %v243
    %v245 = vpop.f32.mrf.mxu0
    %v246 = vadd.f32 %v86, %v245
    %v247 = vpop.f32.mrf.mxu0
    %v248 = vadd.f32 %v90, %v247
    %249 = vdwg.mxu0
    %250 = vmatprep.subr.bf16.mxu0 0
    %251 = vmatpush1.bf16.msra.mxu0 0
    %252 = vmatprep.subr.bf16.mxu0 0
    %253 = vmatpush1.bf16.msra.mxu0 0
    %254 = vmatprep.subr.bf16.mxu0 0
    %255 = vmatpush1.bf16.msra.mxu0 0
    %256 = vmatprep.subr.bf16.mxu0 0
    %257 = vmatpush1.bf16.msra.mxu0 0
    %258 = vmatprep.subr.bf16.mxu0 0
    %259 = vmatpush1.bf16.msra.mxu0 0
    %260 = vmatprep.subr.bf16.mxu0 0
    %261 = vmatpush1.bf16.msra.mxu0 0
    %262 = vmatprep.subr.bf16.mxu0 0
    %263 = vmatpush1.bf16.msra.mxu0 0
    %264 = vmatprep.subr.bf16.mxu0 %v156
    %265 = vmatpush1.bf16.msra.mxu0 %v153
    %266 = vmatprep.subr.bf16.mxu0 0
    %267 = vmatpush2.bf16.msra.mxu0 0
    %268 = vmatprep.subr.bf16.mxu0 0
    %269 = vmatpush2.bf16.msra.mxu0 0
    %270 = vmatprep.subr.bf16.mxu0 0
    %271 = vmatpush2.bf16.msra.mxu0 0
    %272 = vmatprep.subr.bf16.mxu0 0
    %273 = vmatpush2.bf16.msra.mxu0 0
    %274 = vmatprep.subr.bf16.mxu0 0
    %275 = vmatpush2.bf16.msra.mxu0 0
    %276 = vmatprep.subr.bf16.mxu0 0
    %277 = vmatpush2.bf16.msra.mxu0 0
    %278 = vmatprep.subr.bf16.mxu0 0
    %279 = vmatpush2.bf16.msra.mxu0 0
    %280 = vmatprep.subr.bf16.mxu0 0
    %281 = vmatpush2.bf16.msra.mxu0 0
    %282 = vmatprep.mubr.bf16.mxu0 0
    %283 = vmatmul.mubr.bf16.gmra.mxu0 %v137
    %v284 = vpop.f32.mrf.mxu0
    %v285 = vadd.f32 %v94, %v284
    %v286 = vpop.f32.mrf.mxu0
    %v287 = vadd.f32 %v98, %v286
    %v288 = vpop.f32.mrf.mxu0
    %v289 = vadd.f32 %v94, %v288
    %v290 = vpop.f32.mrf.mxu0
    %v291 = vadd.f32 %v98, %v290
    %292 = vdwg.mxu0
    %293 = vmatprep.subr.bf16.mxu0 0
    %294 = vmatpush1.bf16.msra.mxu0 0
    %295 = vmatprep.subr.bf16.mxu0 0
    %296 = vmatpush1.bf16.msra.mxu0 0
    %297 = vmatprep.subr.bf16.mxu0 0
    %298 = vmatpush1.bf16.msra.mxu0 0
    %299 = vmatprep.subr.bf16.mxu0 0
    %300 = vmatpush1.bf16.msra.mxu0 0
    %301 = vmatprep.subr.bf16.mxu0 0
    %302 = vmatpush1.bf16.msra.mxu0 0
    %303 = vmatprep.subr.bf16.mxu0 0
    %304 = vmatpush1.bf16.msra.mxu0 0
    %305 = vmatprep.subr.bf16.mxu0 0
    %306 = vmatpush1.bf16.msra.mxu0 0
    %307 = vmatprep.subr.bf16.mxu0 %v162
    %308 = vmatpush1.bf16.msra.mxu0 %v159
    %309 = vmatprep.subr.bf16.mxu0 0
    %310 = vmatpush2.bf16.msra.mxu0 0
    %311 = vmatprep.subr.bf16.mxu0 0
    %312 = vmatpush2.bf16.msra.mxu0 0
    %313 = vmatprep.subr.bf16.mxu0 0
    %314 = vmatpush2.bf16.msra.mxu0 0
    %315 = vmatprep.subr.bf16.mxu0 0
    %316 = vmatpush2.bf16.msra.mxu0 0
    %317 = vmatprep.subr.bf16.mxu0 0
    %318 = vmatpush2.bf16.msra.mxu0 0
    %319 = vmatprep.subr.bf16.mxu0 0
    %320 = vmatpush2.bf16.msra.mxu0 0
    %321 = vmatprep.subr.bf16.mxu0 0
    %322 = vmatpush2.bf16.msra.mxu0 0
    %323 = vmatprep.subr.bf16.mxu0 0
    %324 = vmatpush2.bf16.msra.mxu0 0
    %325 = vmatprep.mubr.bf16.mxu0 0
    %326 = vmatmul.mubr.bf16.gmra.mxu0 %v137
    %v327 = vpop.f32.mrf.mxu0
    %v328 = vadd.f32 %v102, %v327
    %v329 = vpop.f32.mrf.mxu0
    %v330 = vadd.f32 %v106, %v329
    %v331 = vpop.f32.mrf.mxu0
    %v332 = vadd.f32 %v102, %v331
    %v333 = vpop.f32.mrf.mxu0
    %v334 = vadd.f32 %v106, %v333
    %335 = vdwg.mxu0
    %v336 = vmax.f32 %v199, 0.0
    %v337 = vmax.f32 %v201, 0.0
    %v338 = vmax.f32 %v242, 0.0
    %v339 = vmax.f32 %v244, 0.0
    %v340 = vmax.f32 %v285, 0.0
    %v341 = vmax.f32 %v287, 0.0
    %v342 = vmax.f32 %v328, 0.0
    %v343 = vmax.f32 %v330, 0.0
    %v344 = vmax.f32 %v203, 0.0
    %v345 = vmax.f32 %v205, 0.0
    %v346 = vmax.f32 %v246, 0.0
    %v347 = vmax.f32 %v248, 0.0
    %v348 = vmax.f32 %v289, 0.0
    %v349 = vmax.f32 %v291, 0.0
    %v350 = vmax.f32 %v332, 0.0
    %v351 = vmax.f32 %v334, 0.0
    %v352 = vpack.c.bf16 %v344, %v336
    %v353 = vpack.c.bf16 %v345, %v337
    %v354 = vpack.c.bf16 %v346, %v338
    %v355 = vpack.c.bf16 %v347, %v339
    %v356 = vpack.c.bf16 %v348, %v340
    %v357 = vpack.c.bf16 %v349, %v341
    %v358 = vpack.c.bf16 %v350, %v342
    %v359 = vpack.c.bf16 %v351, %v343
    %v360 = vld [vmem:[#allocation4] sm:$0xff]
    %v361 = vld [vmem:[#allocation4 + $0x8] sm:$0xff]
    %v362 = vld [vmem:[#allocation4 + $0x10] sm:$0xff]
    %v363 = vld [vmem:[#allocation4 + $0x18] sm:$0xff]
    %v364 = vld [vmem:[#allocation4 + $0x20] sm:$0xff]
    %v365 = vld [vmem:[#allocation4 + $0x28] sm:$0xff]
    %v366 = vld [vmem:[#allocation4 + $0x30] sm:$0xff]
    %v367 = vld [vmem:[#allocation4 + $0x38] sm:$0xff]
    %v368 = vld [vmem:[#allocation4 + $0x40] sm:$0xff]
    %v369 = vld [vmem:[#allocation4 + $0x48] sm:$0xff]
    %v370 = vld [vmem:[#allocation4 + $0x50] sm:$0xff]
    %v371 = vld [vmem:[#allocation4 + $0x58] sm:$0xff]
    %v372 = vld [vmem:[#allocation4 + $0x60] sm:$0xff]
    %v373 = vld [vmem:[#allocation4 + $0x68] sm:$0xff]
    %v374 = vld [vmem:[#allocation4 + $0x70] sm:$0xff]
    %v375 = vld [vmem:[#allocation4 + $0x78] sm:$0xff]
    %v376 = vld [vmem:[#allocation4 + $0x80] sm:$0xff]
    %v377 = vld [vmem:[#allocation4 + $0x88] sm:$0xff]
    %v378 = vld [vmem:[#allocation4 + $0x90] sm:$0xff]
    %v379 = vld [vmem:[#allocation4 + $0x98] sm:$0xff]
    %v380 = vld [vmem:[#allocation4 + $0xa0] sm:$0xff]
    %v381 = vld [vmem:[#allocation4 + $0xa8] sm:$0xff]
    %v382 = vld [vmem:[#allocation4 + $0xb0] sm:$0xff]
    %v383 = vld [vmem:[#allocation4 + $0xb8] sm:$0xff]
    %v384 = vld [vmem:[#allocation4 + $0xc0] sm:$0xff]
    %v385 = vld [vmem:[#allocation4 + $0xc8] sm:$0xff]
    %v386 = vld [vmem:[#allocation4 + $0xd0] sm:$0xff]
    %v387 = vld [vmem:[#allocation4 + $0xd8] sm:$0xff]
    %v388 = vld [vmem:[#allocation4 + $0xe0] sm:$0xff]
    %v389 = vld [vmem:[#allocation4 + $0xe8] sm:$0xff]
    %v390 = vld [vmem:[#allocation4 + $0xf0] sm:$0xff]
    %v391 = vld [vmem:[#allocation4 + $0xf8] sm:$0xff]
    %v392 = vld [vmem:[#allocation4 + $0x100] sm:$0xff]
    %v393 = vld [vmem:[#allocation4 + $0x108] sm:$0xff]
    %v394 = vld [vmem:[#allocation4 + $0x110] sm:$0xff]
    %v395 = vld [vmem:[#allocation4 + $0x118] sm:$0xff]
    %v396 = vld [vmem:[#allocation4 + $0x120] sm:$0xff]
    %v397 = vld [vmem:[#allocation4 + $0x128] sm:$0xff]
    %v398 = vld [vmem:[#allocation4 + $0x130] sm:$0xff]
    %v399 = vld [vmem:[#allocation4 + $0x138] sm:$0xff]
    %v400 = vld [vmem:[#allocation4 + $0x140] sm:$0xff]
    %v401 = vld [vmem:[#allocation4 + $0x148] sm:$0xff]
    %v402 = vld [vmem:[#allocation4 + $0x150] sm:$0xff]
    %v403 = vld [vmem:[#allocation4 + $0x158] sm:$0xff]
    %v404 = vld [vmem:[#allocation4 + $0x160] sm:$0xff]
    %v405 = vld [vmem:[#allocation4 + $0x168] sm:$0xff]
    %v406 = vld [vmem:[#allocation4 + $0x170] sm:$0xff]
    %v407 = vld [vmem:[#allocation4 + $0x178] sm:$0xff]
    %v408 = vld [vmem:[#allocation4 + $0x180] sm:$0xff]
    %v409 = vld [vmem:[#allocation4 + $0x188] sm:$0xff]
    %v410 = vld [vmem:[#allocation4 + $0x190] sm:$0xff]
    %v411 = vld [vmem:[#allocation4 + $0x198] sm:$0xff]
    %v412 = vld [vmem:[#allocation4 + $0x1a0] sm:$0xff]
    %v413 = vld [vmem:[#allocation4 + $0x1a8] sm:$0xff]
    %v414 = vld [vmem:[#allocation4 + $0x1b0] sm:$0xff]
    %v415 = vld [vmem:[#allocation4 + $0x1b8] sm:$0xff]
    %v416 = vld [vmem:[#allocation4 + $0x1c0] sm:$0xff]
    %v417 = vld [vmem:[#allocation4 + $0x1c8] sm:$0xff]
    %v418 = vld [vmem:[#allocation4 + $0x1d0] sm:$0xff]
    %v419 = vld [vmem:[#allocation4 + $0x1d8] sm:$0xff]
    %v420 = vld [vmem:[#allocation4 + $0x1e0] sm:$0xff]
    %v421 = vld [vmem:[#allocation4 + $0x1e8] sm:$0xff]
    %v422 = vld [vmem:[#allocation4 + $0x1f0] sm:$0xff]
    %v423 = vld [vmem:[#allocation4 + $0x1f8] sm:$0xff]
    %v424 = vld [vmem:[#allocation4 + $0x200] sm:$0xff]
    %v425 = vld [vmem:[#allocation4 + $0x208] sm:$0xff]
    %v426 = vld [vmem:[#allocation4 + $0x210] sm:$0xff]
    %v427 = vld [vmem:[#allocation4 + $0x218] sm:$0xff]
    %v428 = vld [vmem:[#allocation4 + $0x220] sm:$0xff]
    %v429 = vld [vmem:[#allocation4 + $0x228] sm:$0xff]
    %v430 = vld [vmem:[#allocation4 + $0x230] sm:$0xff]
    %v431 = vld [vmem:[#allocation4 + $0x238] sm:$0xff]
    %v432 = vld [vmem:[#allocation4 + $0x240] sm:$0xff]
    %v433 = vld [vmem:[#allocation4 + $0x248] sm:$0xff]
    %v434 = vld [vmem:[#allocation4 + $0x250] sm:$0xff]
    %v435 = vld [vmem:[#allocation4 + $0x258] sm:$0xff]
    %v436 = vld [vmem:[#allocation4 + $0x260] sm:$0xff]
    %v437 = vld [vmem:[#allocation4 + $0x268] sm:$0xff]
    %v438 = vld [vmem:[#allocation4 + $0x270] sm:$0xff]
    %v439 = vld [vmem:[#allocation4 + $0x278] sm:$0xff]
    %v440 = vld [vmem:[#allocation4 + $0x280] sm:$0xff]
    %v441 = vld [vmem:[#allocation4 + $0x288] sm:$0xff]
    %v442 = vld [vmem:[#allocation4 + $0x290] sm:$0xff]
    %v443 = vld [vmem:[#allocation4 + $0x298] sm:$0xff]
    %v444 = vld [vmem:[#allocation4 + $0x2a0] sm:$0xff]
    %v445 = vld [vmem:[#allocation4 + $0x2a8] sm:$0xff]
    %v446 = vld [vmem:[#allocation4 + $0x2b0] sm:$0xff]
    %v447 = vld [vmem:[#allocation4 + $0x2b8] sm:$0xff]
    %v448 = vld [vmem:[#allocation4 + $0x2c0] sm:$0xff]
    %v449 = vld [vmem:[#allocation4 + $0x2c8] sm:$0xff]
    %v450 = vld [vmem:[#allocation4 + $0x2d0] sm:$0xff]
    %v451 = vld [vmem:[#allocation4 + $0x2d8] sm:$0xff]
    %v452 = vld [vmem:[#allocation4 + $0x2e0] sm:$0xff]
    %v453 = vld [vmem:[#allocation4 + $0x2e8] sm:$0xff]
    %v454 = vld [vmem:[#allocation4 + $0x2f0] sm:$0xff]
    %v455 = vld [vmem:[#allocation4 + $0x2f8] sm:$0xff]
    %v456 = vld [vmem:[#allocation4 + $0x300] sm:$0xff]
    %v457 = vld [vmem:[#allocation4 + $0x308] sm:$0xff]
    %v458 = vld [vmem:[#allocation4 + $0x310] sm:$0xff]
    %v459 = vld [vmem:[#allocation4 + $0x318] sm:$0xff]
    %v460 = vld [vmem:[#allocation4 + $0x320] sm:$0xff]
    %v461 = vld [vmem:[#allocation4 + $0x328] sm:$0xff]
    %v462 = vld [vmem:[#allocation4 + $0x330] sm:$0xff]
    %v463 = vld [vmem:[#allocation4 + $0x338] sm:$0xff]
    %v464 = vld [vmem:[#allocation4 + $0x340] sm:$0xff]
    %v465 = vld [vmem:[#allocation4 + $0x348] sm:$0xff]
    %v466 = vld [vmem:[#allocation4 + $0x350] sm:$0xff]
    %v467 = vld [vmem:[#allocation4 + $0x358] sm:$0xff]
    %v468 = vld [vmem:[#allocation4 + $0x360] sm:$0xff]
    %v469 = vld [vmem:[#allocation4 + $0x368] sm:$0xff]
    %v470 = vld [vmem:[#allocation4 + $0x370] sm:$0xff]
    %v471 = vld [vmem:[#allocation4 + $0x378] sm:$0xff]
    %v472 = vld [vmem:[#allocation4 + $0x380] sm:$0xff]
    %v473 = vld [vmem:[#allocation4 + $0x388] sm:$0xff]
    %v474 = vld [vmem:[#allocation4 + $0x390] sm:$0xff]
    %v475 = vld [vmem:[#allocation4 + $0x398] sm:$0xff]
    %v476 = vld [vmem:[#allocation4 + $0x3a0] sm:$0xff]
    %v477 = vld [vmem:[#allocation4 + $0x3a8] sm:$0xff]
    %v478 = vld [vmem:[#allocation4 + $0x3b0] sm:$0xff]
    %v479 = vld [vmem:[#allocation4 + $0x3b8] sm:$0xff]
    %v480 = vld [vmem:[#allocation4 + $0x3c0] sm:$0xff]
    %v481 = vld [vmem:[#allocation4 + $0x3c8] sm:$0xff]
    %v482 = vld [vmem:[#allocation4 + $0x3d0] sm:$0xff]
    %v483 = vld [vmem:[#allocation4 + $0x3d8] sm:$0xff]
    %v484 = vld [vmem:[#allocation4 + $0x3e0] sm:$0xff]
    %v485 = vld [vmem:[#allocation4 + $0x3e8] sm:$0xff]
    %v486 = vld [vmem:[#allocation4 + $0x3f0] sm:$0xff]
    %v487 = vld [vmem:[#allocation4 + $0x3f8] sm:$0xff]
    %v488 = vld [vmem:[#allocation4 + $0x400] sm:$0xff]
    %v489 = vld [vmem:[#allocation4 + $0x408] sm:$0xff]
    %v490 = vld [vmem:[#allocation4 + $0x410] sm:$0xff]
    %v491 = vld [vmem:[#allocation4 + $0x418] sm:$0xff]
    %v492 = vld [vmem:[#allocation4 + $0x420] sm:$0xff]
    %v493 = vld [vmem:[#allocation4 + $0x428] sm:$0xff]
    %v494 = vld [vmem:[#allocation4 + $0x430] sm:$0xff]
    %v495 = vld [vmem:[#allocation4 + $0x438] sm:$0xff]
    %v496 = vld [vmem:[#allocation4 + $0x440] sm:$0xff]
    %v497 = vld [vmem:[#allocation4 + $0x448] sm:$0xff]
    %v498 = vld [vmem:[#allocation4 + $0x450] sm:$0xff]
    %v499 = vld [vmem:[#allocation4 + $0x458] sm:$0xff]
    %v500 = vld [vmem:[#allocation4 + $0x460] sm:$0xff]
    %v501 = vld [vmem:[#allocation4 + $0x468] sm:$0xff]
    %v502 = vld [vmem:[#allocation4 + $0x470] sm:$0xff]
    %v503 = vld [vmem:[#allocation4 + $0x478] sm:$0xff]
    %v504 = vld [vmem:[#allocation4 + $0x480] sm:$0xff]
    %v505 = vld [vmem:[#allocation4 + $0x488] sm:$0xff]
    %v506 = vld [vmem:[#allocation4 + $0x490] sm:$0xff]
    %v507 = vld [vmem:[#allocation4 + $0x498] sm:$0xff]
    %v508 = vld [vmem:[#allocation4 + $0x4a0] sm:$0xff]
    %v509 = vld [vmem:[#allocation4 + $0x4a8] sm:$0xff]
    %v510 = vld [vmem:[#allocation4 + $0x4b0] sm:$0xff]
    %v511 = vld [vmem:[#allocation4 + $0x4b8] sm:$0xff]
    %v512 = vld [vmem:[#allocation4 + $0x4c0] sm:$0xff]
    %v513 = vld [vmem:[#allocation4 + $0x4c8] sm:$0xff]
    %v514 = vld [vmem:[#allocation4 + $0x4d0] sm:$0xff]
    %v515 = vld [vmem:[#allocation4 + $0x4d8] sm:$0xff]
    %v516 = vld [vmem:[#allocation4 + $0x4e0] sm:$0xff]
    %v517 = vld [vmem:[#allocation4 + $0x4e8] sm:$0xff]
    %v518 = vld [vmem:[#allocation4 + $0x4f0] sm:$0xff]
    %v519 = vld [vmem:[#allocation4 + $0x4f8] sm:$0xff]
    %v520 = vld [vmem:[#allocation4 + $0x500] sm:$0xff]
    %v521 = vld [vmem:[#allocation4 + $0x508] sm:$0xff]
    %v522 = vld [vmem:[#allocation4 + $0x510] sm:$0xff]
    %v523 = vld [vmem:[#allocation4 + $0x518] sm:$0xff]
    %v524 = vld [vmem:[#allocation4 + $0x520] sm:$0xff]
    %v525 = vld [vmem:[#allocation4 + $0x528] sm:$0xff]
    %v526 = vld [vmem:[#allocation4 + $0x530] sm:$0xff]
    %v527 = vld [vmem:[#allocation4 + $0x538] sm:$0xff]
    %v528 = vld [vmem:[#allocation4 + $0x540] sm:$0xff]
    %v529 = vld [vmem:[#allocation4 + $0x548] sm:$0xff]
    %v530 = vld [vmem:[#allocation4 + $0x550] sm:$0xff]
    %v531 = vld [vmem:[#allocation4 + $0x558] sm:$0xff]
    %v532 = vld [vmem:[#allocation4 + $0x560] sm:$0xff]
    %v533 = vld [vmem:[#allocation4 + $0x568] sm:$0xff]
    %v534 = vld [vmem:[#allocation4 + $0x570] sm:$0xff]
    %v535 = vld [vmem:[#allocation4 + $0x578] sm:$0xff]
    %v536 = vld [vmem:[#allocation4 + $0x580] sm:$0xff]
    %v537 = vld [vmem:[#allocation4 + $0x588] sm:$0xff]
    %v538 = vld [vmem:[#allocation4 + $0x590] sm:$0xff]
    %v539 = vld [vmem:[#allocation4 + $0x598] sm:$0xff]
    %v540 = vld [vmem:[#allocation4 + $0x5a0] sm:$0xff]
    %v541 = vld [vmem:[#allocation4 + $0x5a8] sm:$0xff]
    %v542 = vld [vmem:[#allocation4 + $0x5b0] sm:$0xff]
    %v543 = vld [vmem:[#allocation4 + $0x5b8] sm:$0xff]
    %v544 = vld [vmem:[#allocation4 + $0x5c0] sm:$0xff]
    %v545 = vld [vmem:[#allocation4 + $0x5c8] sm:$0xff]
    %v546 = vld [vmem:[#allocation4 + $0x5d0] sm:$0xff]
    %v547 = vld [vmem:[#allocation4 + $0x5d8] sm:$0xff]
    %v548 = vld [vmem:[#allocation4 + $0x5e0] sm:$0xff]
    %v549 = vld [vmem:[#allocation4 + $0x5e8] sm:$0xff]
    %v550 = vld [vmem:[#allocation4 + $0x5f0] sm:$0xff]
    %v551 = vld [vmem:[#allocation4 + $0x5f8] sm:$0xff]
    %v552 = vld [vmem:[#allocation4 + $0x600] sm:$0xff]
    %v553 = vld [vmem:[#allocation4 + $0x608] sm:$0xff]
    %v554 = vld [vmem:[#allocation4 + $0x610] sm:$0xff]
    %v555 = vld [vmem:[#allocation4 + $0x618] sm:$0xff]
    %v556 = vld [vmem:[#allocation4 + $0x620] sm:$0xff]
    %v557 = vld [vmem:[#allocation4 + $0x628] sm:$0xff]
    %v558 = vld [vmem:[#allocation4 + $0x630] sm:$0xff]
    %v559 = vld [vmem:[#allocation4 + $0x638] sm:$0xff]
    %v560 = vld [vmem:[#allocation4 + $0x640] sm:$0xff]
    %v561 = vld [vmem:[#allocation4 + $0x648] sm:$0xff]
    %v562 = vld [vmem:[#allocation4 + $0x650] sm:$0xff]
    %v563 = vld [vmem:[#allocation4 + $0x658] sm:$0xff]
    %v564 = vld [vmem:[#allocation4 + $0x660] sm:$0xff]
    %v565 = vld [vmem:[#allocation4 + $0x668] sm:$0xff]
    %v566 = vld [vmem:[#allocation4 + $0x670] sm:$0xff]
    %v567 = vld [vmem:[#allocation4 + $0x678] sm:$0xff]
    %v568 = vld [vmem:[#allocation4 + $0x680] sm:$0xff]
    %v569 = vld [vmem:[#allocation4 + $0x688] sm:$0xff]
    %v570 = vld [vmem:[#allocation4 + $0x690] sm:$0xff]
    %v571 = vld [vmem:[#allocation4 + $0x698] sm:$0xff]
    %v572 = vld [vmem:[#allocation4 + $0x6a0] sm:$0xff]
    %v573 = vld [vmem:[#allocation4 + $0x6a8] sm:$0xff]
    %v574 = vld [vmem:[#allocation4 + $0x6b0] sm:$0xff]
    %v575 = vld [vmem:[#allocation4 + $0x6b8] sm:$0xff]
    %v576 = vld [vmem:[#allocation4 + $0x6c0] sm:$0xff]
    %v577 = vld [vmem:[#allocation4 + $0x6c8] sm:$0xff]
    %v578 = vld [vmem:[#allocation4 + $0x6d0] sm:$0xff]
    %v579 = vld [vmem:[#allocation4 + $0x6d8] sm:$0xff]
    %v580 = vld [vmem:[#allocation4 + $0x6e0] sm:$0xff]
    %v581 = vld [vmem:[#allocation4 + $0x6e8] sm:$0xff]
    %v582 = vld [vmem:[#allocation4 + $0x6f0] sm:$0xff]
    %v583 = vld [vmem:[#allocation4 + $0x6f8] sm:$0xff]
    %v584 = vld [vmem:[#allocation4 + $0x700] sm:$0xff]
    %v585 = vld [vmem:[#allocation4 + $0x708] sm:$0xff]
    %v586 = vld [vmem:[#allocation4 + $0x710] sm:$0xff]
    %v587 = vld [vmem:[#allocation4 + $0x718] sm:$0xff]
    %v588 = vld [vmem:[#allocation4 + $0x720] sm:$0xff]
    %v589 = vld [vmem:[#allocation4 + $0x728] sm:$0xff]
    %v590 = vld [vmem:[#allocation4 + $0x730] sm:$0xff]
    %v591 = vld [vmem:[#allocation4 + $0x738] sm:$0xff]
    %v592 = vld [vmem:[#allocation4 + $0x740] sm:$0xff]
    %v593 = vld [vmem:[#allocation4 + $0x748] sm:$0xff]
    %v594 = vld [vmem:[#allocation4 + $0x750] sm:$0xff]
    %v595 = vld [vmem:[#allocation4 + $0x758] sm:$0xff]
    %v596 = vld [vmem:[#allocation4 + $0x760] sm:$0xff]
    %v597 = vld [vmem:[#allocation4 + $0x768] sm:$0xff]
    %v598 = vld [vmem:[#allocation4 + $0x770] sm:$0xff]
    %v599 = vld [vmem:[#allocation4 + $0x778] sm:$0xff]
    %v600 = vld [vmem:[#allocation4 + $0x780] sm:$0xff]
    %v601 = vld [vmem:[#allocation4 + $0x788] sm:$0xff]
    %v602 = vld [vmem:[#allocation4 + $0x790] sm:$0xff]
    %v603 = vld [vmem:[#allocation4 + $0x798] sm:$0xff]
    %v604 = vld [vmem:[#allocation4 + $0x7a0] sm:$0xff]
    %v605 = vld [vmem:[#allocation4 + $0x7a8] sm:$0xff]
    %v606 = vld [vmem:[#allocation4 + $0x7b0] sm:$0xff]
    %v607 = vld [vmem:[#allocation4 + $0x7b8] sm:$0xff]
    %v608 = vld [vmem:[#allocation4 + $0x7c0] sm:$0xff]
    %v609 = vld [vmem:[#allocation4 + $0x7c8] sm:$0xff]
    %v610 = vld [vmem:[#allocation4 + $0x7d0] sm:$0xff]
    %v611 = vld [vmem:[#allocation4 + $0x7d8] sm:$0xff]
    %v612 = vld [vmem:[#allocation4 + $0x7e0] sm:$0xff]
    %v613 = vld [vmem:[#allocation4 + $0x7e8] sm:$0xff]
    %v614 = vld [vmem:[#allocation4 + $0x7f0] sm:$0xff]
    %v615 = vld [vmem:[#allocation4 + $0x7f8] sm:$0xff]
    %v616 = vld [vmem:[%s4] sm:$0xf]
    %v618 = vlaneseq
    %v619 = vshrl.u32 %v618, 7
    %v620 = vsub.s32 0, %v619
    %v621 = vrot.slane %v616, %v620
    %v622 = vlaneseq
    %v623 = vshrl.u32 %v622, 7
    %v624 = vsub.s32 1, %v623
    %v625 = vrot.slane %v616, %v624
    %v626 = vlaneseq
    %v627 = vshrl.u32 %v626, 7
    %v628 = vsub.s32 2, %v627
    %v629 = vrot.slane %v616, %v628
    %v630 = vlaneseq
    %v631 = vshrl.u32 %v630, 7
    %v632 = vsub.s32 3, %v631
    %v633 = vrot.slane %v616, %v632
    %v894 = vunpack.c.l.b16 %v360
    %v895 = vunpack.c.h.b16 %v360
    %v896 = vunpack.c.l.b16 %v361
    %v897 = vunpack.c.h.b16 %v361
    %v898 = vunpack.c.l.b16 %v362
    %v899 = vunpack.c.h.b16 %v362
    %v900 = vunpack.c.l.b16 %v363
    %v901 = vunpack.c.h.b16 %v363
    %v902 = vunpack.c.l.b16 %v364
    %v903 = vunpack.c.h.b16 %v364
    %v904 = vunpack.c.l.b16 %v365
    %v905 = vunpack.c.h.b16 %v365
    %v906 = vunpack.c.l.b16 %v366
    %v907 = vunpack.c.h.b16 %v366
    %v908 = vunpack.c.l.b16 %v367
    %v909 = vunpack.c.h.b16 %v367
    %v910 = vunpack.c.l.b16 %v368
    %v911 = vunpack.c.h.b16 %v368
    %v912 = vunpack.c.l.b16 %v369
    %v913 = vunpack.c.h.b16 %v369
    %v914 = vunpack.c.l.b16 %v370
    %v915 = vunpack.c.h.b16 %v370
    %v916 = vunpack.c.l.b16 %v371
    %v917 = vunpack.c.h.b16 %v371
    %v918 = vunpack.c.l.b16 %v372
    %v919 = vunpack.c.h.b16 %v372
    %v920 = vunpack.c.l.b16 %v373
    %v921 = vunpack.c.h.b16 %v373
    %v922 = vunpack.c.l.b16 %v374
    %v923 = vunpack.c.h.b16 %v374
    %v924 = vunpack.c.l.b16 %v375
    %v925 = vunpack.c.h.b16 %v375
    %v926 = vunpack.c.l.b16 %v376
    %v927 = vunpack.c.h.b16 %v376
    %v928 = vunpack.c.l.b16 %v377
    %v929 = vunpack.c.h.b16 %v377
    %v930 = vunpack.c.l.b16 %v378
    %v931 = vunpack.c.h.b16 %v378
    %v932 = vunpack.c.l.b16 %v379
    %v933 = vunpack.c.h.b16 %v379
    %v934 = vunpack.c.l.b16 %v380
    %v935 = vunpack.c.h.b16 %v380
    %v936 = vunpack.c.l.b16 %v381
    %v937 = vunpack.c.h.b16 %v381
    %v938 = vunpack.c.l.b16 %v382
    %v939 = vunpack.c.h.b16 %v382
    %v940 = vunpack.c.l.b16 %v383
    %v941 = vunpack.c.h.b16 %v383
    %v942 = vunpack.c.l.b16 %v384
    %v943 = vunpack.c.h.b16 %v384
    %v944 = vunpack.c.l.b16 %v385
    %v945 = vunpack.c.h.b16 %v385
    %v946 = vunpack.c.l.b16 %v386
    %v947 = vunpack.c.h.b16 %v386
    %v948 = vunpack.c.l.b16 %v387
    %v949 = vunpack.c.h.b16 %v387
    %v950 = vunpack.c.l.b16 %v388
    %v951 = vunpack.c.h.b16 %v388
    %v952 = vunpack.c.l.b16 %v389
    %v953 = vunpack.c.h.b16 %v389
    %v954 = vunpack.c.l.b16 %v390
    %v955 = vunpack.c.h.b16 %v390
    %v956 = vunpack.c.l.b16 %v391
    %v957 = vunpack.c.h.b16 %v391
    %v958 = vunpack.c.l.b16 %v392
    %v959 = vunpack.c.h.b16 %v392
    %v960 = vunpack.c.l.b16 %v393
    %v961 = vunpack.c.h.b16 %v393
    %v962 = vunpack.c.l.b16 %v394
    %v963 = vunpack.c.h.b16 %v394
    %v964 = vunpack.c.l.b16 %v395
    %v965 = vunpack.c.h.b16 %v395
    %v966 = vunpack.c.l.b16 %v396
    %v967 = vunpack.c.h.b16 %v396
    %v968 = vunpack.c.l.b16 %v397
    %v969 = vunpack.c.h.b16 %v397
    %v970 = vunpack.c.l.b16 %v398
    %v971 = vunpack.c.h.b16 %v398
    %v972 = vunpack.c.l.b16 %v399
    %v973 = vunpack.c.h.b16 %v399
    %v974 = vunpack.c.l.b16 %v400
    %v975 = vunpack.c.h.b16 %v400
    %v976 = vunpack.c.l.b16 %v401
    %v977 = vunpack.c.h.b16 %v401
    %v978 = vunpack.c.l.b16 %v402
    %v979 = vunpack.c.h.b16 %v402
    %v980 = vunpack.c.l.b16 %v403
    %v981 = vunpack.c.h.b16 %v403
    %v982 = vunpack.c.l.b16 %v404
    %v983 = vunpack.c.h.b16 %v404
    %v984 = vunpack.c.l.b16 %v405
    %v985 = vunpack.c.h.b16 %v405
    %v986 = vunpack.c.l.b16 %v406
    %v987 = vunpack.c.h.b16 %v406
    %v988 = vunpack.c.l.b16 %v407
    %v989 = vunpack.c.h.b16 %v407
    %v990 = vunpack.c.l.b16 %v408
    %v991 = vunpack.c.h.b16 %v408
    %v992 = vunpack.c.l.b16 %v409
    %v993 = vunpack.c.h.b16 %v409
    %v994 = vunpack.c.l.b16 %v410
    %v995 = vunpack.c.h.b16 %v410
    %v996 = vunpack.c.l.b16 %v411
    %v997 = vunpack.c.h.b16 %v411
    %v998 = vunpack.c.l.b16 %v412
    %v999 = vunpack.c.h.b16 %v412
    %v1000 = vunpack.c.l.b16 %v413
    %v1001 = vunpack.c.h.b16 %v413
    %v1002 = vunpack.c.l.b16 %v414
    %v1003 = vunpack.c.h.b16 %v414
    %v1004 = vunpack.c.l.b16 %v415
    %v1005 = vunpack.c.h.b16 %v415
    %v1006 = vunpack.c.l.b16 %v416
    %v1007 = vunpack.c.h.b16 %v416
    %v1008 = vunpack.c.l.b16 %v417
    %v1009 = vunpack.c.h.b16 %v417
    %v1010 = vunpack.c.l.b16 %v418
    %v1011 = vunpack.c.h.b16 %v418
    %v1012 = vunpack.c.l.b16 %v419
    %v1013 = vunpack.c.h.b16 %v419
    %v1014 = vunpack.c.l.b16 %v420
    %v1015 = vunpack.c.h.b16 %v420
    %v1016 = vunpack.c.l.b16 %v421
    %v1017 = vunpack.c.h.b16 %v421
    %v1018 = vunpack.c.l.b16 %v422
    %v1019 = vunpack.c.h.b16 %v422
    %v1020 = vunpack.c.l.b16 %v423
    %v1021 = vunpack.c.h.b16 %v423
    %v1022 = vunpack.c.l.b16 %v424
    %v1023 = vunpack.c.h.b16 %v424
    %v1024 = vunpack.c.l.b16 %v425
    %v1025 = vunpack.c.h.b16 %v425
    %v1026 = vunpack.c.l.b16 %v426
    %v1027 = vunpack.c.h.b16 %v426
    %v1028 = vunpack.c.l.b16 %v427
    %v1029 = vunpack.c.h.b16 %v427
    %v1030 = vunpack.c.l.b16 %v428
    %v1031 = vunpack.c.h.b16 %v428
    %v1032 = vunpack.c.l.b16 %v429
    %v1033 = vunpack.c.h.b16 %v429
    %v1034 = vunpack.c.l.b16 %v430
    %v1035 = vunpack.c.h.b16 %v430
    %v1036 = vunpack.c.l.b16 %v431
    %v1037 = vunpack.c.h.b16 %v431
    %v1038 = vunpack.c.l.b16 %v432
    %v1039 = vunpack.c.h.b16 %v432
    %v1040 = vunpack.c.l.b16 %v433
    %v1041 = vunpack.c.h.b16 %v433
    %v1042 = vunpack.c.l.b16 %v434
    %v1043 = vunpack.c.h.b16 %v434
    %v1044 = vunpack.c.l.b16 %v435
    %v1045 = vunpack.c.h.b16 %v435
    %v1046 = vunpack.c.l.b16 %v436
    %v1047 = vunpack.c.h.b16 %v436
    %v1048 = vunpack.c.l.b16 %v437
    %v1049 = vunpack.c.h.b16 %v437
    %v1050 = vunpack.c.l.b16 %v438
    %v1051 = vunpack.c.h.b16 %v438
    %v1052 = vunpack.c.l.b16 %v439
    %v1053 = vunpack.c.h.b16 %v439
    %v1054 = vunpack.c.l.b16 %v440
    %v1055 = vunpack.c.h.b16 %v440
    %v1056 = vunpack.c.l.b16 %v441
    %v1057 = vunpack.c.h.b16 %v441
    %v1058 = vunpack.c.l.b16 %v442
    %v1059 = vunpack.c.h.b16 %v442
    %v1060 = vunpack.c.l.b16 %v443
    %v1061 = vunpack.c.h.b16 %v443
    %v1062 = vunpack.c.l.b16 %v444
    %v1063 = vunpack.c.h.b16 %v444
    %v1064 = vunpack.c.l.b16 %v445
    %v1065 = vunpack.c.h.b16 %v445
    %v1066 = vunpack.c.l.b16 %v446
    %v1067 = vunpack.c.h.b16 %v446
    %v1068 = vunpack.c.l.b16 %v447
    %v1069 = vunpack.c.h.b16 %v447
    %v1070 = vunpack.c.l.b16 %v448
    %v1071 = vunpack.c.h.b16 %v448
    %v1072 = vunpack.c.l.b16 %v449
    %v1073 = vunpack.c.h.b16 %v449
    %v1074 = vunpack.c.l.b16 %v450
    %v1075 = vunpack.c.h.b16 %v450
    %v1076 = vunpack.c.l.b16 %v451
    %v1077 = vunpack.c.h.b16 %v451
    %v1078 = vunpack.c.l.b16 %v452
    %v1079 = vunpack.c.h.b16 %v452
    %v1080 = vunpack.c.l.b16 %v453
    %v1081 = vunpack.c.h.b16 %v453
    %v1082 = vunpack.c.l.b16 %v454
    %v1083 = vunpack.c.h.b16 %v454
    %v1084 = vunpack.c.l.b16 %v455
    %v1085 = vunpack.c.h.b16 %v455
    %v1086 = vunpack.c.l.b16 %v456
    %v1087 = vunpack.c.h.b16 %v456
    %v1088 = vunpack.c.l.b16 %v457
    %v1089 = vunpack.c.h.b16 %v457
    %v1090 = vunpack.c.l.b16 %v458
    %v1091 = vunpack.c.h.b16 %v458
    %v1092 = vunpack.c.l.b16 %v459
    %v1093 = vunpack.c.h.b16 %v459
    %v1094 = vunpack.c.l.b16 %v460
    %v1095 = vunpack.c.h.b16 %v460
    %v1096 = vunpack.c.l.b16 %v461
    %v1097 = vunpack.c.h.b16 %v461
    %v1098 = vunpack.c.l.b16 %v462
    %v1099 = vunpack.c.h.b16 %v462
    %v1100 = vunpack.c.l.b16 %v463
    %v1101 = vunpack.c.h.b16 %v463
    %v1102 = vunpack.c.l.b16 %v464
    %v1103 = vunpack.c.h.b16 %v464
    %v1104 = vunpack.c.l.b16 %v465
    %v1105 = vunpack.c.h.b16 %v465
    %v1106 = vunpack.c.l.b16 %v466
    %v1107 = vunpack.c.h.b16 %v466
    %v1108 = vunpack.c.l.b16 %v467
    %v1109 = vunpack.c.h.b16 %v467
    %v1110 = vunpack.c.l.b16 %v468
    %v1111 = vunpack.c.h.b16 %v468
    %v1112 = vunpack.c.l.b16 %v469
    %v1113 = vunpack.c.h.b16 %v469
    %v1114 = vunpack.c.l.b16 %v470
    %v1115 = vunpack.c.h.b16 %v470
    %v1116 = vunpack.c.l.b16 %v471
    %v1117 = vunpack.c.h.b16 %v471
    %v1118 = vunpack.c.l.b16 %v472
    %v1119 = vunpack.c.h.b16 %v472
    %v1120 = vunpack.c.l.b16 %v473
    %v1121 = vunpack.c.h.b16 %v473
    %v1122 = vunpack.c.l.b16 %v474
    %v1123 = vunpack.c.h.b16 %v474
    %v1124 = vunpack.c.l.b16 %v475
    %v1125 = vunpack.c.h.b16 %v475
    %v1126 = vunpack.c.l.b16 %v476
    %v1127 = vunpack.c.h.b16 %v476
    %v1128 = vunpack.c.l.b16 %v477
    %v1129 = vunpack.c.h.b16 %v477
    %v1130 = vunpack.c.l.b16 %v478
    %v1131 = vunpack.c.h.b16 %v478
    %v1132 = vunpack.c.l.b16 %v479
    %v1133 = vunpack.c.h.b16 %v479
    %v1134 = vunpack.c.l.b16 %v480
    %v1135 = vunpack.c.h.b16 %v480
    %v1136 = vunpack.c.l.b16 %v481
    %v1137 = vunpack.c.h.b16 %v481
    %v1138 = vunpack.c.l.b16 %v482
    %v1139 = vunpack.c.h.b16 %v482
    %v1140 = vunpack.c.l.b16 %v483
    %v1141 = vunpack.c.h.b16 %v483
    %v1142 = vunpack.c.l.b16 %v484
    %v1143 = vunpack.c.h.b16 %v484
    %v1144 = vunpack.c.l.b16 %v485
    %v1145 = vunpack.c.h.b16 %v485
    %v1146 = vunpack.c.l.b16 %v486
    %v1147 = vunpack.c.h.b16 %v486
    %v1148 = vunpack.c.l.b16 %v487
    %v1149 = vunpack.c.h.b16 %v487
    %v1150 = vunpack.c.l.b16 %v488
    %v1151 = vunpack.c.h.b16 %v488
    %v1152 = vunpack.c.l.b16 %v489
    %v1153 = vunpack.c.h.b16 %v489
    %v1154 = vunpack.c.l.b16 %v490
    %v1155 = vunpack.c.h.b16 %v490
    %v1156 = vunpack.c.l.b16 %v491
    %v1157 = vunpack.c.h.b16 %v491
    %v1158 = vunpack.c.l.b16 %v492
    %v1159 = vunpack.c.h.b16 %v492
    %v1160 = vunpack.c.l.b16 %v493
    %v1161 = vunpack.c.h.b16 %v493
    %v1162 = vunpack.c.l.b16 %v494
    %v1163 = vunpack.c.h.b16 %v494
    %v1164 = vunpack.c.l.b16 %v495
    %v1165 = vunpack.c.h.b16 %v495
    %v1166 = vunpack.c.l.b16 %v496
    %v1167 = vunpack.c.h.b16 %v496
    %v1168 = vunpack.c.l.b16 %v497
    %v1169 = vunpack.c.h.b16 %v497
    %v1170 = vunpack.c.l.b16 %v498
    %v1171 = vunpack.c.h.b16 %v498
    %v1172 = vunpack.c.l.b16 %v499
    %v1173 = vunpack.c.h.b16 %v499
    %v1174 = vunpack.c.l.b16 %v500
    %v1175 = vunpack.c.h.b16 %v500
    %v1176 = vunpack.c.l.b16 %v501
    %v1177 = vunpack.c.h.b16 %v501
    %v1178 = vunpack.c.l.b16 %v502
    %v1179 = vunpack.c.h.b16 %v502
    %v1180 = vunpack.c.l.b16 %v503
    %v1181 = vunpack.c.h.b16 %v503
    %v1182 = vunpack.c.l.b16 %v504
    %v1183 = vunpack.c.h.b16 %v504
    %v1184 = vunpack.c.l.b16 %v505
    %v1185 = vunpack.c.h.b16 %v505
    %v1186 = vunpack.c.l.b16 %v506
    %v1187 = vunpack.c.h.b16 %v506
    %v1188 = vunpack.c.l.b16 %v507
    %v1189 = vunpack.c.h.b16 %v507
    %v1190 = vunpack.c.l.b16 %v508
    %v1191 = vunpack.c.h.b16 %v508
    %v1192 = vunpack.c.l.b16 %v509
    %v1193 = vunpack.c.h.b16 %v509
    %v1194 = vunpack.c.l.b16 %v510
    %v1195 = vunpack.c.h.b16 %v510
    %v1196 = vunpack.c.l.b16 %v511
    %v1197 = vunpack.c.h.b16 %v511
    %v1198 = vunpack.c.l.b16 %v512
    %v1199 = vunpack.c.h.b16 %v512
    %v1200 = vunpack.c.l.b16 %v513
    %v1201 = vunpack.c.h.b16 %v513
    %v1202 = vunpack.c.l.b16 %v514
    %v1203 = vunpack.c.h.b16 %v514
    %v1204 = vunpack.c.l.b16 %v515
    %v1205 = vunpack.c.h.b16 %v515
    %v1206 = vunpack.c.l.b16 %v516
    %v1207 = vunpack.c.h.b16 %v516
    %v1208 = vunpack.c.l.b16 %v517
    %v1209 = vunpack.c.h.b16 %v517
    %v1210 = vunpack.c.l.b16 %v518
    %v1211 = vunpack.c.h.b16 %v518
    %v1212 = vunpack.c.l.b16 %v519
    %v1213 = vunpack.c.h.b16 %v519
    %v1214 = vunpack.c.l.b16 %v520
    %v1215 = vunpack.c.h.b16 %v520
    %v1216 = vunpack.c.l.b16 %v521
    %v1217 = vunpack.c.h.b16 %v521
    %v1218 = vunpack.c.l.b16 %v522
    %v1219 = vunpack.c.h.b16 %v522
    %v1220 = vunpack.c.l.b16 %v523
    %v1221 = vunpack.c.h.b16 %v523
    %v1222 = vunpack.c.l.b16 %v524
    %v1223 = vunpack.c.h.b16 %v524
    %v1224 = vunpack.c.l.b16 %v525
    %v1225 = vunpack.c.h.b16 %v525
    %v1226 = vunpack.c.l.b16 %v526
    %v1227 = vunpack.c.h.b16 %v526
    %v1228 = vunpack.c.l.b16 %v527
    %v1229 = vunpack.c.h.b16 %v527
    %v1230 = vunpack.c.l.b16 %v528
    %v1231 = vunpack.c.h.b16 %v528
    %v1232 = vunpack.c.l.b16 %v529
    %v1233 = vunpack.c.h.b16 %v529
    %v1234 = vunpack.c.l.b16 %v530
    %v1235 = vunpack.c.h.b16 %v530
    %v1236 = vunpack.c.l.b16 %v531
    %v1237 = vunpack.c.h.b16 %v531
    %v1238 = vunpack.c.l.b16 %v532
    %v1239 = vunpack.c.h.b16 %v532
    %v1240 = vunpack.c.l.b16 %v533
    %v1241 = vunpack.c.h.b16 %v533
    %v1242 = vunpack.c.l.b16 %v534
    %v1243 = vunpack.c.h.b16 %v534
    %v1244 = vunpack.c.l.b16 %v535
    %v1245 = vunpack.c.h.b16 %v535
    %v1246 = vunpack.c.l.b16 %v536
    %v1247 = vunpack.c.h.b16 %v536
    %v1248 = vunpack.c.l.b16 %v537
    %v1249 = vunpack.c.h.b16 %v537
    %v1250 = vunpack.c.l.b16 %v538
    %v1251 = vunpack.c.h.b16 %v538
    %v1252 = vunpack.c.l.b16 %v539
    %v1253 = vunpack.c.h.b16 %v539
    %v1254 = vunpack.c.l.b16 %v540
    %v1255 = vunpack.c.h.b16 %v540
    %v1256 = vunpack.c.l.b16 %v541
    %v1257 = vunpack.c.h.b16 %v541
    %v1258 = vunpack.c.l.b16 %v542
    %v1259 = vunpack.c.h.b16 %v542
    %v1260 = vunpack.c.l.b16 %v543
    %v1261 = vunpack.c.h.b16 %v543
    %v1262 = vunpack.c.l.b16 %v544
    %v1263 = vunpack.c.h.b16 %v544
    %v1264 = vunpack.c.l.b16 %v545
    %v1265 = vunpack.c.h.b16 %v545
    %v1266 = vunpack.c.l.b16 %v546
    %v1267 = vunpack.c.h.b16 %v546
    %v1268 = vunpack.c.l.b16 %v547
    %v1269 = vunpack.c.h.b16 %v547
    %v1270 = vunpack.c.l.b16 %v548
    %v1271 = vunpack.c.h.b16 %v548
    %v1272 = vunpack.c.l.b16 %v549
    %v1273 = vunpack.c.h.b16 %v549
    %v1274 = vunpack.c.l.b16 %v550
    %v1275 = vunpack.c.h.b16 %v550
    %v1276 = vunpack.c.l.b16 %v551
    %v1277 = vunpack.c.h.b16 %v551
    %v1278 = vunpack.c.l.b16 %v552
    %v1279 = vunpack.c.h.b16 %v552
    %v1280 = vunpack.c.l.b16 %v553
    %v1281 = vunpack.c.h.b16 %v553
    %v1282 = vunpack.c.l.b16 %v554
    %v1283 = vunpack.c.h.b16 %v554
    %v1284 = vunpack.c.l.b16 %v555
    %v1285 = vunpack.c.h.b16 %v555
    %v1286 = vunpack.c.l.b16 %v556
    %v1287 = vunpack.c.h.b16 %v556
    %v1288 = vunpack.c.l.b16 %v557
    %v1289 = vunpack.c.h.b16 %v557
    %v1290 = vunpack.c.l.b16 %v558
    %v1291 = vunpack.c.h.b16 %v558
    %v1292 = vunpack.c.l.b16 %v559
    %v1293 = vunpack.c.h.b16 %v559
    %v1294 = vunpack.c.l.b16 %v560
    %v1295 = vunpack.c.h.b16 %v560
    %v1296 = vunpack.c.l.b16 %v561
    %v1297 = vunpack.c.h.b16 %v561
    %v1298 = vunpack.c.l.b16 %v562
    %v1299 = vunpack.c.h.b16 %v562
    %v1300 = vunpack.c.l.b16 %v563
    %v1301 = vunpack.c.h.b16 %v563
    %v1302 = vunpack.c.l.b16 %v564
    %v1303 = vunpack.c.h.b16 %v564
    %v1304 = vunpack.c.l.b16 %v565
    %v1305 = vunpack.c.h.b16 %v565
    %v1306 = vunpack.c.l.b16 %v566
    %v1307 = vunpack.c.h.b16 %v566
    %v1308 = vunpack.c.l.b16 %v567
    %v1309 = vunpack.c.h.b16 %v567
    %v1310 = vunpack.c.l.b16 %v568
    %v1311 = vunpack.c.h.b16 %v568
    %v1312 = vunpack.c.l.b16 %v569
    %v1313 = vunpack.c.h.b16 %v569
    %v1314 = vunpack.c.l.b16 %v570
    %v1315 = vunpack.c.h.b16 %v570
    %v1316 = vunpack.c.l.b16 %v571
    %v1317 = vunpack.c.h.b16 %v571
    %v1318 = vunpack.c.l.b16 %v572
    %v1319 = vunpack.c.h.b16 %v572
    %v1320 = vunpack.c.l.b16 %v573
    %v1321 = vunpack.c.h.b16 %v573
    %v1322 = vunpack.c.l.b16 %v574
    %v1323 = vunpack.c.h.b16 %v574
    %v1324 = vunpack.c.l.b16 %v575
    %v1325 = vunpack.c.h.b16 %v575
    %v1326 = vunpack.c.l.b16 %v576
    %v1327 = vunpack.c.h.b16 %v576
    %v1328 = vunpack.c.l.b16 %v577
    %v1329 = vunpack.c.h.b16 %v577
    %v1330 = vunpack.c.l.b16 %v578
    %v1331 = vunpack.c.h.b16 %v578
    %v1332 = vunpack.c.l.b16 %v579
    %v1333 = vunpack.c.h.b16 %v579
    %v1334 = vunpack.c.l.b16 %v580
    %v1335 = vunpack.c.h.b16 %v580
    %v1336 = vunpack.c.l.b16 %v581
    %v1337 = vunpack.c.h.b16 %v581
    %v1338 = vunpack.c.l.b16 %v582
    %v1339 = vunpack.c.h.b16 %v582
    %v1340 = vunpack.c.l.b16 %v583
    %v1341 = vunpack.c.h.b16 %v583
    %v1342 = vunpack.c.l.b16 %v584
    %v1343 = vunpack.c.h.b16 %v584
    %v1344 = vunpack.c.l.b16 %v585
    %v1345 = vunpack.c.h.b16 %v585
    %v1346 = vunpack.c.l.b16 %v586
    %v1347 = vunpack.c.h.b16 %v586
    %v1348 = vunpack.c.l.b16 %v587
    %v1349 = vunpack.c.h.b16 %v587
    %v1350 = vunpack.c.l.b16 %v588
    %v1351 = vunpack.c.h.b16 %v588
    %v1352 = vunpack.c.l.b16 %v589
    %v1353 = vunpack.c.h.b16 %v589
    %v1354 = vunpack.c.l.b16 %v590
    %v1355 = vunpack.c.h.b16 %v590
    %v1356 = vunpack.c.l.b16 %v591
    %v1357 = vunpack.c.h.b16 %v591
    %v1358 = vunpack.c.l.b16 %v592
    %v1359 = vunpack.c.h.b16 %v592
    %v1360 = vunpack.c.l.b16 %v593
    %v1361 = vunpack.c.h.b16 %v593
    %v1362 = vunpack.c.l.b16 %v594
    %v1363 = vunpack.c.h.b16 %v594
    %v1364 = vunpack.c.l.b16 %v595
    %v1365 = vunpack.c.h.b16 %v595
    %v1366 = vunpack.c.l.b16 %v596
    %v1367 = vunpack.c.h.b16 %v596
    %v1368 = vunpack.c.l.b16 %v597
    %v1369 = vunpack.c.h.b16 %v597
    %v1370 = vunpack.c.l.b16 %v598
    %v1371 = vunpack.c.h.b16 %v598
    %v1372 = vunpack.c.l.b16 %v599
    %v1373 = vunpack.c.h.b16 %v599
    %v1374 = vunpack.c.l.b16 %v600
    %v1375 = vunpack.c.h.b16 %v600
    %v1376 = vunpack.c.l.b16 %v601
    %v1377 = vunpack.c.h.b16 %v601
    %v1378 = vunpack.c.l.b16 %v602
    %v1379 = vunpack.c.h.b16 %v602
    %v1380 = vunpack.c.l.b16 %v603
    %v1381 = vunpack.c.h.b16 %v603
    %v1382 = vunpack.c.l.b16 %v604
    %v1383 = vunpack.c.h.b16 %v604
    %v1384 = vunpack.c.l.b16 %v605
    %v1385 = vunpack.c.h.b16 %v605
    %v1386 = vunpack.c.l.b16 %v606
    %v1387 = vunpack.c.h.b16 %v606
    %v1388 = vunpack.c.l.b16 %v607
    %v1389 = vunpack.c.h.b16 %v607
    %v1390 = vunpack.c.l.b16 %v608
    %v1391 = vunpack.c.h.b16 %v608
    %v1392 = vunpack.c.l.b16 %v609
    %v1393 = vunpack.c.h.b16 %v609
    %v1394 = vunpack.c.l.b16 %v610
    %v1395 = vunpack.c.h.b16 %v610
    %v1396 = vunpack.c.l.b16 %v611
    %v1397 = vunpack.c.h.b16 %v611
    %v1398 = vunpack.c.l.b16 %v612
    %v1399 = vunpack.c.h.b16 %v612
    %v1400 = vunpack.c.l.b16 %v613
    %v1401 = vunpack.c.h.b16 %v613
    %v1402 = vunpack.c.l.b16 %v614
    %v1403 = vunpack.c.h.b16 %v614
    %v1404 = vunpack.c.l.b16 %v615
    %v1405 = vunpack.c.h.b16 %v615
    %v1406 = vpack.c.b16 %v898, %v894
    %v1407 = vpack.c.b16 %v899, %v895
    %v1408 = vpack.c.b16 %v900, %v896
    %v1409 = vpack.c.b16 %v901, %v897
    %v1410 = vpack.c.b16 %v906, %v902
    %v1411 = vpack.c.b16 %v907, %v903
    %v1412 = vpack.c.b16 %v908, %v904
    %v1413 = vpack.c.b16 %v909, %v905
    %v1414 = vpack.c.b16 %v914, %v910
    %v1415 = vpack.c.b16 %v915, %v911
    %v1416 = vpack.c.b16 %v916, %v912
    %v1417 = vpack.c.b16 %v917, %v913
    %v1418 = vpack.c.b16 %v922, %v918
    %v1419 = vpack.c.b16 %v923, %v919
    %v1420 = vpack.c.b16 %v924, %v920
    %v1421 = vpack.c.b16 %v925, %v921
    %v1422 = vpack.c.b16 %v930, %v926
    %v1423 = vpack.c.b16 %v931, %v927
    %v1424 = vpack.c.b16 %v932, %v928
    %v1425 = vpack.c.b16 %v933, %v929
    %v1426 = vpack.c.b16 %v938, %v934
    %v1427 = vpack.c.b16 %v939, %v935
    %v1428 = vpack.c.b16 %v940, %v936
    %v1429 = vpack.c.b16 %v941, %v937
    %v1430 = vpack.c.b16 %v946, %v942
    %v1431 = vpack.c.b16 %v947, %v943
    %v1432 = vpack.c.b16 %v948, %v944
    %v1433 = vpack.c.b16 %v949, %v945
    %v1434 = vpack.c.b16 %v954, %v950
    %v1435 = vpack.c.b16 %v955, %v951
    %v1436 = vpack.c.b16 %v956, %v952
    %v1437 = vpack.c.b16 %v957, %v953
    %v1438 = vpack.c.b16 %v962, %v958
    %v1439 = vpack.c.b16 %v963, %v959
    %v1440 = vpack.c.b16 %v964, %v960
    %v1441 = vpack.c.b16 %v965, %v961
    %v1442 = vpack.c.b16 %v970, %v966
    %v1443 = vpack.c.b16 %v971, %v967
    %v1444 = vpack.c.b16 %v972, %v968
    %v1445 = vpack.c.b16 %v973, %v969
    %v1446 = vpack.c.b16 %v978, %v974
    %v1447 = vpack.c.b16 %v979, %v975
    %v1448 = vpack.c.b16 %v980, %v976
    %v1449 = vpack.c.b16 %v981, %v977
    %v1450 = vpack.c.b16 %v986, %v982
    %v1451 = vpack.c.b16 %v987, %v983
    %v1452 = vpack.c.b16 %v988, %v984
    %v1453 = vpack.c.b16 %v989, %v985
    %v1454 = vpack.c.b16 %v994, %v990
    %v1455 = vpack.c.b16 %v995, %v991
    %v1456 = vpack.c.b16 %v996, %v992
    %v1457 = vpack.c.b16 %v997, %v993
    %v1458 = vpack.c.b16 %v1002, %v998
    %v1459 = vpack.c.b16 %v1003, %v999
    %v1460 = vpack.c.b16 %v1004, %v1000
    %v1461 = vpack.c.b16 %v1005, %v1001
    %v1462 = vpack.c.b16 %v1010, %v1006
    %v1463 = vpack.c.b16 %v1011, %v1007
    %v1464 = vpack.c.b16 %v1012, %v1008
    %v1465 = vpack.c.b16 %v1013, %v1009
    %v1466 = vpack.c.b16 %v1018, %v1014
    %v1467 = vpack.c.b16 %v1019, %v1015
    %v1468 = vpack.c.b16 %v1020, %v1016
    %v1469 = vpack.c.b16 %v1021, %v1017
    %v1470 = vpack.c.b16 %v1026, %v1022
    %v1471 = vpack.c.b16 %v1027, %v1023
    %v1472 = vpack.c.b16 %v1028, %v1024
    %v1473 = vpack.c.b16 %v1029, %v1025
    %v1474 = vpack.c.b16 %v1034, %v1030
    %v1475 = vpack.c.b16 %v1035, %v1031
    %v1476 = vpack.c.b16 %v1036, %v1032
    %v1477 = vpack.c.b16 %v1037, %v1033
    %v1478 = vpack.c.b16 %v1042, %v1038
    %v1479 = vpack.c.b16 %v1043, %v1039
    %v1480 = vpack.c.b16 %v1044, %v1040
    %v1481 = vpack.c.b16 %v1045, %v1041
    %v1482 = vpack.c.b16 %v1050, %v1046
    %v1483 = vpack.c.b16 %v1051, %v1047
    %v1484 = vpack.c.b16 %v1052, %v1048
    %v1485 = vpack.c.b16 %v1053, %v1049
    %v1486 = vpack.c.b16 %v1058, %v1054
    %v1487 = vpack.c.b16 %v1059, %v1055
    %v1488 = vpack.c.b16 %v1060, %v1056
    %v1489 = vpack.c.b16 %v1061, %v1057
    %v1490 = vpack.c.b16 %v1066, %v1062
    %v1491 = vpack.c.b16 %v1067, %v1063
    %v1492 = vpack.c.b16 %v1068, %v1064
    %v1493 = vpack.c.b16 %v1069, %v1065
    %v1494 = vpack.c.b16 %v1074, %v1070
    %v1495 = vpack.c.b16 %v1075, %v1071
    %v1496 = vpack.c.b16 %v1076, %v1072
    %v1497 = vpack.c.b16 %v1077, %v1073
    %v1498 = vpack.c.b16 %v1082, %v1078
    %v1499 = vpack.c.b16 %v1083, %v1079
    %v1500 = vpack.c.b16 %v1084, %v1080
    %v1501 = vpack.c.b16 %v1085, %v1081
    %v1502 = vpack.c.b16 %v1090, %v1086
    %v1503 = vpack.c.b16 %v1091, %v1087
    %v1504 = vpack.c.b16 %v1092, %v1088
    %v1505 = vpack.c.b16 %v1093, %v1089
    %v1506 = vpack.c.b16 %v1098, %v1094
    %v1507 = vpack.c.b16 %v1099, %v1095
    %v1508 = vpack.c.b16 %v1100, %v1096
    %v1509 = vpack.c.b16 %v1101, %v1097
    %v1510 = vpack.c.b16 %v1106, %v1102
    %v1511 = vpack.c.b16 %v1107, %v1103
    %v1512 = vpack.c.b16 %v1108, %v1104
    %v1513 = vpack.c.b16 %v1109, %v1105
    %v1514 = vpack.c.b16 %v1114, %v1110
    %v1515 = vpack.c.b16 %v1115, %v1111
    %v1516 = vpack.c.b16 %v1116, %v1112
    %v1517 = vpack.c.b16 %v1117, %v1113
    %v1518 = vpack.c.b16 %v1122, %v1118
    %v1519 = vpack.c.b16 %v1123, %v1119
    %v1520 = vpack.c.b16 %v1124, %v1120
    %v1521 = vpack.c.b16 %v1125, %v1121
    %v1522 = vpack.c.b16 %v1130, %v1126
    %v1523 = vpack.c.b16 %v1131, %v1127
    %v1524 = vpack.c.b16 %v1132, %v1128
    %v1525 = vpack.c.b16 %v1133, %v1129
    %v1526 = vpack.c.b16 %v1138, %v1134
    %v1527 = vpack.c.b16 %v1139, %v1135
    %v1528 = vpack.c.b16 %v1140, %v1136
    %v1529 = vpack.c.b16 %v1141, %v1137
    %v1530 = vpack.c.b16 %v1146, %v1142
    %v1531 = vpack.c.b16 %v1147, %v1143
    %v1532 = vpack.c.b16 %v1148, %v1144
    %v1533 = vpack.c.b16 %v1149, %v1145
    %v1534 = vpack.c.b16 %v1154, %v1150
    %v1535 = vpack.c.b16 %v1155, %v1151
    %v1536 = vpack.c.b16 %v1156, %v1152
    %v1537 = vpack.c.b16 %v1157, %v1153
    %v1538 = vpack.c.b16 %v1162, %v1158
    %v1539 = vpack.c.b16 %v1163, %v1159
    %v1540 = vpack.c.b16 %v1164, %v1160
    %v1541 = vpack.c.b16 %v1165, %v1161
    %v1542 = vpack.c.b16 %v1170, %v1166
    %v1543 = vpack.c.b16 %v1171, %v1167
    %v1544 = vpack.c.b16 %v1172, %v1168
    %v1545 = vpack.c.b16 %v1173, %v1169
    %v1546 = vpack.c.b16 %v1178, %v1174
    %v1547 = vpack.c.b16 %v1179, %v1175
    %v1548 = vpack.c.b16 %v1180, %v1176
    %v1549 = vpack.c.b16 %v1181, %v1177
    %v1550 = vpack.c.b16 %v1186, %v1182
    %v1551 = vpack.c.b16 %v1187, %v1183
    %v1552 = vpack.c.b16 %v1188, %v1184
    %v1553 = vpack.c.b16 %v1189, %v1185
    %v1554 = vpack.c.b16 %v1194, %v1190
    %v1555 = vpack.c.b16 %v1195, %v1191
    %v1556 = vpack.c.b16 %v1196, %v1192
    %v1557 = vpack.c.b16 %v1197, %v1193
    %v1558 = vpack.c.b16 %v1202, %v1198
    %v1559 = vpack.c.b16 %v1203, %v1199
    %v1560 = vpack.c.b16 %v1204, %v1200
    %v1561 = vpack.c.b16 %v1205, %v1201
    %v1562 = vpack.c.b16 %v1210, %v1206
    %v1563 = vpack.c.b16 %v1211, %v1207
    %v1564 = vpack.c.b16 %v1212, %v1208
    %v1565 = vpack.c.b16 %v1213, %v1209
    %v1566 = vpack.c.b16 %v1218, %v1214
    %v1567 = vpack.c.b16 %v1219, %v1215
    %v1568 = vpack.c.b16 %v1220, %v1216
    %v1569 = vpack.c.b16 %v1221, %v1217
    %v1570 = vpack.c.b16 %v1226, %v1222
    %v1571 = vpack.c.b16 %v1227, %v1223
    %v1572 = vpack.c.b16 %v1228, %v1224
    %v1573 = vpack.c.b16 %v1229, %v1225
    %v1574 = vpack.c.b16 %v1234, %v1230
    %v1575 = vpack.c.b16 %v1235, %v1231
    %v1576 = vpack.c.b16 %v1236, %v1232
    %v1577 = vpack.c.b16 %v1237, %v1233
    %v1578 = vpack.c.b16 %v1242, %v1238
    %v1579 = vpack.c.b16 %v1243, %v1239
    %v1580 = vpack.c.b16 %v1244, %v1240
    %v1581 = vpack.c.b16 %v1245, %v1241
    %v1582 = vpack.c.b16 %v1250, %v1246
    %v1583 = vpack.c.b16 %v1251, %v1247
    %v1584 = vpack.c.b16 %v1252, %v1248
    %v1585 = vpack.c.b16 %v1253, %v1249
    %v1586 = vpack.c.b16 %v1258, %v1254
    %v1587 = vpack.c.b16 %v1259, %v1255
    %v1588 = vpack.c.b16 %v1260, %v1256
    %v1589 = vpack.c.b16 %v1261, %v1257
    %v1590 = vpack.c.b16 %v1266, %v1262
    %v1591 = vpack.c.b16 %v1267, %v1263
    %v1592 = vpack.c.b16 %v1268, %v1264
    %v1593 = vpack.c.b16 %v1269, %v1265
    %v1594 = vpack.c.b16 %v1274, %v1270
    %v1595 = vpack.c.b16 %v1275, %v1271
    %v1596 = vpack.c.b16 %v1276, %v1272
    %v1597 = vpack.c.b16 %v1277, %v1273
    %v1598 = vpack.c.b16 %v1282, %v1278
    %v1599 = vpack.c.b16 %v1283, %v1279
    %v1600 = vpack.c.b16 %v1284, %v1280
    %v1601 = vpack.c.b16 %v1285, %v1281
    %v1602 = vpack.c.b16 %v1290, %v1286
    %v1603 = vpack.c.b16 %v1291, %v1287
    %v1604 = vpack.c.b16 %v1292, %v1288
    %v1605 = vpack.c.b16 %v1293, %v1289
    %v1606 = vpack.c.b16 %v1298, %v1294
    %v1607 = vpack.c.b16 %v1299, %v1295
    %v1608 = vpack.c.b16 %v1300, %v1296
    %v1609 = vpack.c.b16 %v1301, %v1297
    %v1610 = vpack.c.b16 %v1306, %v1302
    %v1611 = vpack.c.b16 %v1307, %v1303
    %v1612 = vpack.c.b16 %v1308, %v1304
    %v1613 = vpack.c.b16 %v1309, %v1305
    %v1614 = vpack.c.b16 %v1314, %v1310
    %v1615 = vpack.c.b16 %v1315, %v1311
    %v1616 = vpack.c.b16 %v1316, %v1312
    %v1617 = vpack.c.b16 %v1317, %v1313
    %v1618 = vpack.c.b16 %v1322, %v1318
    %v1619 = vpack.c.b16 %v1323, %v1319
    %v1620 = vpack.c.b16 %v1324, %v1320
    %v1621 = vpack.c.b16 %v1325, %v1321
    %v1622 = vpack.c.b16 %v1330, %v1326
    %v1623 = vpack.c.b16 %v1331, %v1327
    %v1624 = vpack.c.b16 %v1332, %v1328
    %v1625 = vpack.c.b16 %v1333, %v1329
    %v1626 = vpack.c.b16 %v1338, %v1334
    %v1627 = vpack.c.b16 %v1339, %v1335
    %v1628 = vpack.c.b16 %v1340, %v1336
    %v1629 = vpack.c.b16 %v1341, %v1337
    %v1630 = vpack.c.b16 %v1346, %v1342
    %v1631 = vpack.c.b16 %v1347, %v1343
    %v1632 = vpack.c.b16 %v1348, %v1344
    %v1633 = vpack.c.b16 %v1349, %v1345
    %v1634 = vpack.c.b16 %v1354, %v1350
    %v1635 = vpack.c.b16 %v1355, %v1351
    %v1636 = vpack.c.b16 %v1356, %v1352
    %v1637 = vpack.c.b16 %v1357, %v1353
    %v1638 = vpack.c.b16 %v1362, %v1358
    %v1639 = vpack.c.b16 %v1363, %v1359
    %v1640 = vpack.c.b16 %v1364, %v1360
    %v1641 = vpack.c.b16 %v1365, %v1361
    %v1642 = vpack.c.b16 %v1370, %v1366
    %v1643 = vpack.c.b16 %v1371, %v1367
    %v1644 = vpack.c.b16 %v1372, %v1368
    %v1645 = vpack.c.b16 %v1373, %v1369
    %v1646 = vpack.c.b16 %v1378, %v1374
    %v1647 = vpack.c.b16 %v1379, %v1375
    %v1648 = vpack.c.b16 %v1380, %v1376
    %v1649 = vpack.c.b16 %v1381, %v1377
    %v1650 = vpack.c.b16 %v1386, %v1382
    %v1651 = vpack.c.b16 %v1387, %v1383
    %v1652 = vpack.c.b16 %v1388, %v1384
    %v1653 = vpack.c.b16 %v1389, %v1385
    %v1654 = vpack.c.b16 %v1394, %v1390
    %v1655 = vpack.c.b16 %v1395, %v1391
    %v1656 = vpack.c.b16 %v1396, %v1392
    %v1657 = vpack.c.b16 %v1397, %v1393
    %v1658 = vpack.c.b16 %v1402, %v1398
    %v1659 = vpack.c.b16 %v1403, %v1399
    %v1660 = vpack.c.b16 %v1404, %v1400
    %v1661 = vpack.c.b16 %v1405, %v1401
    %1918 = vmatprep.subr.bf16.mxu0 %v1435
    %1919 = vmatpush1.bf16.msra.mxu0 %v1434
    %1920 = vmatprep.subr.bf16.mxu0 %v1431
    %1921 = vmatpush1.bf16.msra.mxu0 %v1430
    %1922 = vmatprep.subr.bf16.mxu0 %v1427
    %1923 = vmatpush1.bf16.msra.mxu0 %v1426
    %1924 = vmatprep.subr.bf16.mxu0 %v1423
    %1925 = vmatpush1.bf16.msra.mxu0 %v1422
    %1926 = vmatprep.subr.bf16.mxu0 %v1419
    %1927 = vmatpush1.bf16.msra.mxu0 %v1418
    %1928 = vmatprep.subr.bf16.mxu0 %v1415
    %1929 = vmatpush1.bf16.msra.mxu0 %v1414
    %1930 = vmatprep.subr.bf16.mxu0 %v1411
    %1931 = vmatpush1.bf16.msra.mxu0 %v1410
    %1932 = vmatprep.subr.bf16.mxu0 %v1407
    %1933 = vmatpush1.bf16.msra.mxu0 %v1406
    %1934 = vmatprep.subr.bf16.mxu0 %v1467
    %1935 = vmatpush2.bf16.msra.mxu0 %v1466
    %1936 = vmatprep.subr.bf16.mxu0 %v1463
    %1937 = vmatpush2.bf16.msra.mxu0 %v1462
    %1938 = vmatprep.subr.bf16.mxu0 %v1459
    %1939 = vmatpush2.bf16.msra.mxu0 %v1458
    %1940 = vmatprep.subr.bf16.mxu0 %v1455
    %1941 = vmatpush2.bf16.msra.mxu0 %v1454
    %1942 = vmatprep.subr.bf16.mxu0 %v1451
    %1943 = vmatpush2.bf16.msra.mxu0 %v1450
    %1944 = vmatprep.subr.bf16.mxu0 %v1447
    %1945 = vmatpush2.bf16.msra.mxu0 %v1446
    %1946 = vmatprep.subr.bf16.mxu0 %v1443
    %1947 = vmatpush2.bf16.msra.mxu0 %v1442
    %1948 = vmatprep.subr.bf16.mxu0 %v1439
    %1949 = vmatpush2.bf16.msra.mxu0 %v1438
    %1950 = vmatprep.mubr.bf16.mxu0 %v353
    %1951 = vmatmul.mubr.bf16.gmra.mxu0 %v352
    %v1952 = vpop.f32.mrf.mxu0
    %v1953 = vadd.f32 %v621, %v1952
    %v1954 = vpop.f32.mrf.mxu0
    %v1955 = vadd.f32 %v625, %v1954
    %v1956 = vpop.f32.mrf.mxu0
    %v1957 = vadd.f32 %v621, %v1956
    %v1958 = vpop.f32.mrf.mxu0
    %v1959 = vadd.f32 %v625, %v1958
    %1960 = vdwg.mxu0
    %1961 = vmatprep.subr.bf16.mxu0 %v1499
    %1962 = vmatpush1.bf16.msra.mxu0 %v1498
    %1963 = vmatprep.subr.bf16.mxu0 %v1495
    %1964 = vmatpush1.bf16.msra.mxu0 %v1494
    %1965 = vmatprep.subr.bf16.mxu0 %v1491
    %1966 = vmatpush1.bf16.msra.mxu0 %v1490
    %1967 = vmatprep.subr.bf16.mxu0 %v1487
    %1968 = vmatpush1.bf16.msra.mxu0 %v1486
    %1969 = vmatprep.subr.bf16.mxu0 %v1483
    %1970 = vmatpush1.bf16.msra.mxu0 %v1482
    %1971 = vmatprep.subr.bf16.mxu0 %v1479
    %1972 = vmatpush1.bf16.msra.mxu0 %v1478
    %1973 = vmatprep.subr.bf16.mxu0 %v1475
    %1974 = vmatpush1.bf16.msra.mxu0 %v1474
    %1975 = vmatprep.subr.bf16.mxu0 %v1471
    %1976 = vmatpush1.bf16.msra.mxu0 %v1470
    %1977 = vmatprep.subr.bf16.mxu0 %v1531
    %1978 = vmatpush2.bf16.msra.mxu0 %v1530
    %1979 = vmatprep.subr.bf16.mxu0 %v1527
    %1980 = vmatpush2.bf16.msra.mxu0 %v1526
    %1981 = vmatprep.subr.bf16.mxu0 %v1523
    %1982 = vmatpush2.bf16.msra.mxu0 %v1522
    %1983 = vmatprep.subr.bf16.mxu0 %v1519
    %1984 = vmatpush2.bf16.msra.mxu0 %v1518
    %1985 = vmatprep.subr.bf16.mxu0 %v1515
    %1986 = vmatpush2.bf16.msra.mxu0 %v1514
    %1987 = vmatprep.subr.bf16.mxu0 %v1511
    %1988 = vmatpush2.bf16.msra.mxu0 %v1510
    %1989 = vmatprep.subr.bf16.mxu0 %v1507
    %1990 = vmatpush2.bf16.msra.mxu0 %v1506
    %1991 = vmatprep.subr.bf16.mxu0 %v1503
    %1992 = vmatpush2.bf16.msra.mxu0 %v1502
    %1993 = vmatprep.mubr.bf16.mxu0 %v355
    %1994 = vmatmul.mubr.bf16.gmra.mxu0 %v354
    %v1995 = vpop.f32.mrf.mxu0
    %v1996 = vadd.f32 %v1953, %v1995
    %v1997 = vpop.f32.mrf.mxu0
    %v1998 = vadd.f32 %v1955, %v1997
    %v1999 = vpop.f32.mrf.mxu0
    %v2000 = vadd.f32 %v1957, %v1999
    %v2001 = vpop.f32.mrf.mxu0
    %v2002 = vadd.f32 %v1959, %v2001
    %2003 = vdwg.mxu0
    %2004 = vmatprep.subr.bf16.mxu0 %v1563
    %2005 = vmatpush1.bf16.msra.mxu0 %v1562
    %2006 = vmatprep.subr.bf16.mxu0 %v1559
    %2007 = vmatpush1.bf16.msra.mxu0 %v1558
    %2008 = vmatprep.subr.bf16.mxu0 %v1555
    %2009 = vmatpush1.bf16.msra.mxu0 %v1554
    %2010 = vmatprep.subr.bf16.mxu0 %v1551
    %2011 = vmatpush1.bf16.msra.mxu0 %v1550
    %2012 = vmatprep.subr.bf16.mxu0 %v1547
    %2013 = vmatpush1.bf16.msra.mxu0 %v1546
    %2014 = vmatprep.subr.bf16.mxu0 %v1543
    %2015 = vmatpush1.bf16.msra.mxu0 %v1542
    %2016 = vmatprep.subr.bf16.mxu0 %v1539
    %2017 = vmatpush1.bf16.msra.mxu0 %v1538
    %2018 = vmatprep.subr.bf16.mxu0 %v1535
    %2019 = vmatpush1.bf16.msra.mxu0 %v1534
    %2020 = vmatprep.subr.bf16.mxu0 %v1595
    %2021 = vmatpush2.bf16.msra.mxu0 %v1594
    %2022 = vmatprep.subr.bf16.mxu0 %v1591
    %2023 = vmatpush2.bf16.msra.mxu0 %v1590
    %2024 = vmatprep.subr.bf16.mxu0 %v1587
    %2025 = vmatpush2.bf16.msra.mxu0 %v1586
    %2026 = vmatprep.subr.bf16.mxu0 %v1583
    %2027 = vmatpush2.bf16.msra.mxu0 %v1582
    %2028 = vmatprep.subr.bf16.mxu0 %v1579
    %2029 = vmatpush2.bf16.msra.mxu0 %v1578
    %2030 = vmatprep.subr.bf16.mxu0 %v1575
    %2031 = vmatpush2.bf16.msra.mxu0 %v1574
    %2032 = vmatprep.subr.bf16.mxu0 %v1571
    %2033 = vmatpush2.bf16.msra.mxu0 %v1570
    %2034 = vmatprep.subr.bf16.mxu0 %v1567
    %2035 = vmatpush2.bf16.msra.mxu0 %v1566
    %2036 = vmatprep.mubr.bf16.mxu0 %v357
    %2037 = vmatmul.mubr.bf16.gmra.mxu0 %v356
    %v2038 = vpop.f32.mrf.mxu0
    %v2039 = vadd.f32 %v1996, %v2038
    %v2040 = vpop.f32.mrf.mxu0
    %v2041 = vadd.f32 %v1998, %v2040
    %v2042 = vpop.f32.mrf.mxu0
    %v2043 = vadd.f32 %v2000, %v2042
    %v2044 = vpop.f32.mrf.mxu0
    %v2045 = vadd.f32 %v2002, %v2044
    %2046 = vdwg.mxu0
    %2047 = vmatprep.subr.bf16.mxu0 %v1627
    %2048 = vmatpush1.bf16.msra.mxu0 %v1626
    %2049 = vmatprep.subr.bf16.mxu0 %v1623
    %2050 = vmatpush1.bf16.msra.mxu0 %v1622
    %2051 = vmatprep.subr.bf16.mxu0 %v1619
    %2052 = vmatpush1.bf16.msra.mxu0 %v1618
    %2053 = vmatprep.subr.bf16.mxu0 %v1615
    %2054 = vmatpush1.bf16.msra.mxu0 %v1614
    %2055 = vmatprep.subr.bf16.mxu0 %v1611
    %2056 = vmatpush1.bf16.msra.mxu0 %v1610
    %2057 = vmatprep.subr.bf16.mxu0 %v1607
    %2058 = vmatpush1.bf16.msra.mxu0 %v1606
    %2059 = vmatprep.subr.bf16.mxu0 %v1603
    %2060 = vmatpush1.bf16.msra.mxu0 %v1602
    %2061 = vmatprep.subr.bf16.mxu0 %v1599
    %2062 = vmatpush1.bf16.msra.mxu0 %v1598
    %2063 = vmatprep.subr.bf16.mxu0 %v1659
    %2064 = vmatpush2.bf16.msra.mxu0 %v1658
    %2065 = vmatprep.subr.bf16.mxu0 %v1655
    %2066 = vmatpush2.bf16.msra.mxu0 %v1654
    %2067 = vmatprep.subr.bf16.mxu0 %v1651
    %2068 = vmatpush2.bf16.msra.mxu0 %v1650
    %2069 = vmatprep.subr.bf16.mxu0 %v1647
    %2070 = vmatpush2.bf16.msra.mxu0 %v1646
    %2071 = vmatprep.subr.bf16.mxu0 %v1643
    %2072 = vmatpush2.bf16.msra.mxu0 %v1642
    %2073 = vmatprep.subr.bf16.mxu0 %v1639
    %2074 = vmatpush2.bf16.msra.mxu0 %v1638
    %2075 = vmatprep.subr.bf16.mxu0 %v1635
    %2076 = vmatpush2.bf16.msra.mxu0 %v1634
    %2077 = vmatprep.subr.bf16.mxu0 %v1631
    %2078 = vmatpush2.bf16.msra.mxu0 %v1630
    %2079 = vmatprep.mubr.bf16.mxu0 %v359
    %2080 = vmatmul.mubr.bf16.gmra.mxu0 %v358
    %v2081 = vpop.f32.mrf.mxu0
    %v2082 = vadd.f32 %v2039, %v2081
    %v2083 = vpop.f32.mrf.mxu0
    %v2084 = vadd.f32 %v2041, %v2083
    %v2085 = vpop.f32.mrf.mxu0
    %v2086 = vadd.f32 %v2043, %v2085
    %v2087 = vpop.f32.mrf.mxu0
    %v2088 = vadd.f32 %v2045, %v2087
    %2089 = vdwg.mxu0
    %2090 = vmatprep.subr.bf16.mxu0 %v1437
    %2091 = vmatpush1.bf16.msra.mxu0 %v1436
    %2092 = vmatprep.subr.bf16.mxu0 %v1433
    %2093 = vmatpush1.bf16.msra.mxu0 %v1432
    %2094 = vmatprep.subr.bf16.mxu0 %v1429
    %2095 = vmatpush1.bf16.msra.mxu0 %v1428
    %2096 = vmatprep.subr.bf16.mxu0 %v1425
    %2097 = vmatpush1.bf16.msra.mxu0 %v1424
    %2098 = vmatprep.subr.bf16.mxu0 %v1421
    %2099 = vmatpush1.bf16.msra.mxu0 %v1420
    %2100 = vmatprep.subr.bf16.mxu0 %v1417
    %2101 = vmatpush1.bf16.msra.mxu0 %v1416
    %2102 = vmatprep.subr.bf16.mxu0 %v1413
    %2103 = vmatpush1.bf16.msra.mxu0 %v1412
    %2104 = vmatprep.subr.bf16.mxu0 %v1409
    %2105 = vmatpush1.bf16.msra.mxu0 %v1408
    %2106 = vmatprep.subr.bf16.mxu0 %v1469
    %2107 = vmatpush2.bf16.msra.mxu0 %v1468
    %2108 = vmatprep.subr.bf16.mxu0 %v1465
    %2109 = vmatpush2.bf16.msra.mxu0 %v1464
    %2110 = vmatprep.subr.bf16.mxu0 %v1461
    %2111 = vmatpush2.bf16.msra.mxu0 %v1460
    %2112 = vmatprep.subr.bf16.mxu0 %v1457
    %2113 = vmatpush2.bf16.msra.mxu0 %v1456
    %2114 = vmatprep.subr.bf16.mxu0 %v1453
    %2115 = vmatpush2.bf16.msra.mxu0 %v1452
    %2116 = vmatprep.subr.bf16.mxu0 %v1449
    %2117 = vmatpush2.bf16.msra.mxu0 %v1448
    %2118 = vmatprep.subr.bf16.mxu0 %v1445
    %2119 = vmatpush2.bf16.msra.mxu0 %v1444
    %2120 = vmatprep.subr.bf16.mxu0 %v1441
    %2121 = vmatpush2.bf16.msra.mxu0 %v1440
    %2122 = vmatprep.mubr.bf16.mxu0 %v353
    %2123 = vmatmul.mubr.bf16.gmra.mxu0 %v352
    %v2124 = vpop.f32.mrf.mxu0
    %v2125 = vadd.f32 %v629, %v2124
    %v2126 = vpop.f32.mrf.mxu0
    %v2127 = vadd.f32 %v633, %v2126
    %v2128 = vpop.f32.mrf.mxu0
    %v2129 = vadd.f32 %v629, %v2128
    %v2130 = vpop.f32.mrf.mxu0
    %v2131 = vadd.f32 %v633, %v2130
    %2132 = vdwg.mxu0
    %2133 = vmatprep.subr.bf16.mxu0 %v1501
    %2134 = vmatpush1.bf16.msra.mxu0 %v1500
    %2135 = vmatprep.subr.bf16.mxu0 %v1497
    %2136 = vmatpush1.bf16.msra.mxu0 %v1496
    %2137 = vmatprep.subr.bf16.mxu0 %v1493
    %2138 = vmatpush1.bf16.msra.mxu0 %v1492
    %2139 = vmatprep.subr.bf16.mxu0 %v1489
    %2140 = vmatpush1.bf16.msra.mxu0 %v1488
    %2141 = vmatprep.subr.bf16.mxu0 %v1485
    %2142 = vmatpush1.bf16.msra.mxu0 %v1484
    %2143 = vmatprep.subr.bf16.mxu0 %v1481
    %2144 = vmatpush1.bf16.msra.mxu0 %v1480
    %2145 = vmatprep.subr.bf16.mxu0 %v1477
    %2146 = vmatpush1.bf16.msra.mxu0 %v1476
    %2147 = vmatprep.subr.bf16.mxu0 %v1473
    %2148 = vmatpush1.bf16.msra.mxu0 %v1472
    %2149 = vmatprep.subr.bf16.mxu0 %v1533
    %2150 = vmatpush2.bf16.msra.mxu0 %v1532
    %2151 = vmatprep.subr.bf16.mxu0 %v1529
    %2152 = vmatpush2.bf16.msra.mxu0 %v1528
    %2153 = vmatprep.subr.bf16.mxu0 %v1525
    %2154 = vmatpush2.bf16.msra.mxu0 %v1524
    %2155 = vmatprep.subr.bf16.mxu0 %v1521
    %2156 = vmatpush2.bf16.msra.mxu0 %v1520
    %2157 = vmatprep.subr.bf16.mxu0 %v1517
    %2158 = vmatpush2.bf16.msra.mxu0 %v1516
    %2159 = vmatprep.subr.bf16.mxu0 %v1513
    %2160 = vmatpush2.bf16.msra.mxu0 %v1512
    %2161 = vmatprep.subr.bf16.mxu0 %v1509
    %2162 = vmatpush2.bf16.msra.mxu0 %v1508
    %2163 = vmatprep.subr.bf16.mxu0 %v1505
    %2164 = vmatpush2.bf16.msra.mxu0 %v1504
    %2165 = vmatprep.mubr.bf16.mxu0 %v355
    %2166 = vmatmul.mubr.bf16.gmra.mxu0 %v354
    %v2167 = vpop.f32.mrf.mxu0
    %v2168 = vadd.f32 %v2125, %v2167
    %v2169 = vpop.f32.mrf.mxu0
    %v2170 = vadd.f32 %v2127, %v2169
    %v2171 = vpop.f32.mrf.mxu0
    %v2172 = vadd.f32 %v2129, %v2171
    %v2173 = vpop.f32.mrf.mxu0
    %v2174 = vadd.f32 %v2131, %v2173
    %2175 = vdwg.mxu0
    %2176 = vmatprep.subr.bf16.mxu0 %v1565
    %2177 = vmatpush1.bf16.msra.mxu0 %v1564
    %2178 = vmatprep.subr.bf16.mxu0 %v1561
    %2179 = vmatpush1.bf16.msra.mxu0 %v1560
    %2180 = vmatprep.subr.bf16.mxu0 %v1557
    %2181 = vmatpush1.bf16.msra.mxu0 %v1556
    %2182 = vmatprep.subr.bf16.mxu0 %v1553
    %2183 = vmatpush1.bf16.msra.mxu0 %v1552
    %2184 = vmatprep.subr.bf16.mxu0 %v1549
    %2185 = vmatpush1.bf16.msra.mxu0 %v1548
    %2186 = vmatprep.subr.bf16.mxu0 %v1545
    %2187 = vmatpush1.bf16.msra.mxu0 %v1544
    %2188 = vmatprep.subr.bf16.mxu0 %v1541
    %2189 = vmatpush1.bf16.msra.mxu0 %v1540
    %2190 = vmatprep.subr.bf16.mxu0 %v1537
    %2191 = vmatpush1.bf16.msra.mxu0 %v1536
    %2192 = vmatprep.subr.bf16.mxu0 %v1597
    %2193 = vmatpush2.bf16.msra.mxu0 %v1596
    %2194 = vmatprep.subr.bf16.mxu0 %v1593
    %2195 = vmatpush2.bf16.msra.mxu0 %v1592
    %2196 = vmatprep.subr.bf16.mxu0 %v1589
    %2197 = vmatpush2.bf16.msra.mxu0 %v1588
    %2198 = vmatprep.subr.bf16.mxu0 %v1585
    %2199 = vmatpush2.bf16.msra.mxu0 %v1584
    %2200 = vmatprep.subr.bf16.mxu0 %v1581
    %2201 = vmatpush2.bf16.msra.mxu0 %v1580
    %2202 = vmatprep.subr.bf16.mxu0 %v1577
    %2203 = vmatpush2.bf16.msra.mxu0 %v1576
    %2204 = vmatprep.subr.bf16.mxu0 %v1573
    %2205 = vmatpush2.bf16.msra.mxu0 %v1572
    %2206 = vmatprep.subr.bf16.mxu0 %v1569
    %2207 = vmatpush2.bf16.msra.mxu0 %v1568
    %2208 = vmatprep.mubr.bf16.mxu0 %v357
    %2209 = vmatmul.mubr.bf16.gmra.mxu0 %v356
    %v2210 = vpop.f32.mrf.mxu0
    %v2211 = vadd.f32 %v2168, %v2210
    %v2212 = vpop.f32.mrf.mxu0
    %v2213 = vadd.f32 %v2170, %v2212
    %v2214 = vpop.f32.mrf.mxu0
    %v2215 = vadd.f32 %v2172, %v2214
    %v2216 = vpop.f32.mrf.mxu0
    %v2217 = vadd.f32 %v2174, %v2216
    %2218 = vdwg.mxu0
    %2219 = vmatprep.subr.bf16.mxu0 %v1629
    %2220 = vmatpush1.bf16.msra.mxu0 %v1628
    %2221 = vmatprep.subr.bf16.mxu0 %v1625
    %2222 = vmatpush1.bf16.msra.mxu0 %v1624
    %2223 = vmatprep.subr.bf16.mxu0 %v1621
    %2224 = vmatpush1.bf16.msra.mxu0 %v1620
    %2225 = vmatprep.subr.bf16.mxu0 %v1617
    %2226 = vmatpush1.bf16.msra.mxu0 %v1616
    %2227 = vmatprep.subr.bf16.mxu0 %v1613
    %2228 = vmatpush1.bf16.msra.mxu0 %v1612
    %2229 = vmatprep.subr.bf16.mxu0 %v1609
    %2230 = vmatpush1.bf16.msra.mxu0 %v1608
    %2231 = vmatprep.subr.bf16.mxu0 %v1605
    %2232 = vmatpush1.bf16.msra.mxu0 %v1604
    %2233 = vmatprep.subr.bf16.mxu0 %v1601
    %2234 = vmatpush1.bf16.msra.mxu0 %v1600
    %2235 = vmatprep.subr.bf16.mxu0 %v1661
    %2236 = vmatpush2.bf16.msra.mxu0 %v1660
    %2237 = vmatprep.subr.bf16.mxu0 %v1657
    %2238 = vmatpush2.bf16.msra.mxu0 %v1656
    %2239 = vmatprep.subr.bf16.mxu0 %v1653
    %2240 = vmatpush2.bf16.msra.mxu0 %v1652
    %2241 = vmatprep.subr.bf16.mxu0 %v1649
    %2242 = vmatpush2.bf16.msra.mxu0 %v1648
    %2243 = vmatprep.subr.bf16.mxu0 %v1645
    %2244 = vmatpush2.bf16.msra.mxu0 %v1644
    %2245 = vmatprep.subr.bf16.mxu0 %v1641
    %2246 = vmatpush2.bf16.msra.mxu0 %v1640
    %2247 = vmatprep.subr.bf16.mxu0 %v1637
    %2248 = vmatpush2.bf16.msra.mxu0 %v1636
    %2249 = vmatprep.subr.bf16.mxu0 %v1633
    %2250 = vmatpush2.bf16.msra.mxu0 %v1632
    %2251 = vmatprep.mubr.bf16.mxu0 %v359
    %2252 = vmatmul.mubr.bf16.gmra.mxu0 %v358
    %v2253 = vpop.f32.mrf.mxu0
    %v2254 = vadd.f32 %v2211, %v2253
    %v2255 = vpop.f32.mrf.mxu0
    %v2256 = vadd.f32 %v2213, %v2255
    %v2257 = vpop.f32.mrf.mxu0
    %v2258 = vadd.f32 %v2215, %v2257
    %v2259 = vpop.f32.mrf.mxu0
    %v2260 = vadd.f32 %v2217, %v2259
    %2261 = vdwg.mxu0
    %v2262 = vmax.f32 %v2082, 0.0
    %v2263 = vmax.f32 %v2084, 0.0
    %v2264 = vmax.f32 %v2254, 0.0
    %v2265 = vmax.f32 %v2256, 0.0
    %v2266 = vmax.f32 %v2086, 0.0
    %v2267 = vmax.f32 %v2088, 0.0
    %v2268 = vmax.f32 %v2258, 0.0
    %v2269 = vmax.f32 %v2260, 0.0
    %v2270 = vpack.c.bf16 %v2266, %v2262
    %v2271 = vpack.c.bf16 %v2267, %v2263
    %v2272 = vpack.c.bf16 %v2268, %v2264
    %v2273 = vpack.c.bf16 %v2269, %v2265
    %v2274 = vld [vmem:[#allocation6] sm:$0xf]
    %v2275 = vld [vmem:[#allocation6 + $0x4] sm:$0xf]
    %v2276 = vld [vmem:[#allocation6 + $0x8] sm:$0xf]
    %v2277 = vld [vmem:[#allocation6 + $0xc] sm:$0xf]
    %v2278 = vld [vmem:[#allocation6 + $0x10] sm:$0xf]
    %v2279 = vld [vmem:[#allocation6 + $0x14] sm:$0xf]
    %v2280 = vld [vmem:[#allocation6 + $0x18] sm:$0xf]
    %v2281 = vld [vmem:[#allocation6 + $0x1c] sm:$0xf]
    %v2282 = vld [vmem:[#allocation6 + $0x20] sm:$0xf]
    %v2283 = vld [vmem:[#allocation6 + $0x24] sm:$0xf]
    %v2284 = vld [vmem:[#allocation6 + $0x28] sm:$0xf]
    %v2285 = vld [vmem:[#allocation6 + $0x2c] sm:$0xf]
    %v2286 = vld [vmem:[#allocation6 + $0x30] sm:$0xf]
    %v2287 = vld [vmem:[#allocation6 + $0x34] sm:$0xf]
    %v2288 = vld [vmem:[#allocation6 + $0x38] sm:$0xf]
    %v2289 = vld [vmem:[#allocation6 + $0x3c] sm:$0xf]
    %v2290 = vld [vmem:[#allocation6 + $0x40] sm:$0xf]
    %v2291 = vld [vmem:[#allocation6 + $0x44] sm:$0xf]
    %v2292 = vld [vmem:[#allocation6 + $0x48] sm:$0xf]
    %v2293 = vld [vmem:[#allocation6 + $0x4c] sm:$0xf]
    %v2294 = vld [vmem:[#allocation6 + $0x50] sm:$0xf]
    %v2295 = vld [vmem:[#allocation6 + $0x54] sm:$0xf]
    %v2296 = vld [vmem:[#allocation6 + $0x58] sm:$0xf]
    %v2297 = vld [vmem:[#allocation6 + $0x5c] sm:$0xf]
    %v2298 = vld [vmem:[#allocation6 + $0x60] sm:$0xf]
    %v2299 = vld [vmem:[#allocation6 + $0x64] sm:$0xf]
    %v2300 = vld [vmem:[#allocation6 + $0x68] sm:$0xf]
    %v2301 = vld [vmem:[#allocation6 + $0x6c] sm:$0xf]
    %v2302 = vld [vmem:[#allocation6 + $0x70] sm:$0xf]
    %v2303 = vld [vmem:[#allocation6 + $0x74] sm:$0xf]
    %v2304 = vld [vmem:[#allocation6 + $0x78] sm:$0xf]
    %v2305 = vld [vmem:[#allocation6 + $0x7c] sm:$0xf]
    %v2306 = vld [vmem:[#allocation6 + $0x80] sm:$0xf]
    %v2307 = vld [vmem:[#allocation6 + $0x84] sm:$0xf]
    %v2308 = vld [vmem:[#allocation6 + $0x88] sm:$0xf]
    %v2309 = vld [vmem:[#allocation6 + $0x8c] sm:$0xf]
    %v2310 = vld [vmem:[#allocation6 + $0x90] sm:$0xf]
    %v2311 = vld [vmem:[#allocation6 + $0x94] sm:$0xf]
    %v2312 = vld [vmem:[#allocation6 + $0x98] sm:$0xf]
    %v2313 = vld [vmem:[#allocation6 + $0x9c] sm:$0xf]
    %v2314 = vld [vmem:[#allocation6 + $0xa0] sm:$0xf]
    %v2315 = vld [vmem:[#allocation6 + $0xa4] sm:$0xf]
    %v2316 = vld [vmem:[#allocation6 + $0xa8] sm:$0xf]
    %v2317 = vld [vmem:[#allocation6 + $0xac] sm:$0xf]
    %v2318 = vld [vmem:[#allocation6 + $0xb0] sm:$0xf]
    %v2319 = vld [vmem:[#allocation6 + $0xb4] sm:$0xf]
    %v2320 = vld [vmem:[#allocation6 + $0xb8] sm:$0xf]
    %v2321 = vld [vmem:[#allocation6 + $0xbc] sm:$0xf]
    %v2322 = vld [vmem:[#allocation6 + $0xc0] sm:$0xf]
    %v2323 = vld [vmem:[#allocation6 + $0xc4] sm:$0xf]
    %v2324 = vld [vmem:[#allocation6 + $0xc8] sm:$0xf]
    %v2325 = vld [vmem:[#allocation6 + $0xcc] sm:$0xf]
    %v2326 = vld [vmem:[#allocation6 + $0xd0] sm:$0xf]
    %v2327 = vld [vmem:[#allocation6 + $0xd4] sm:$0xf]
    %v2328 = vld [vmem:[#allocation6 + $0xd8] sm:$0xf]
    %v2329 = vld [vmem:[#allocation6 + $0xdc] sm:$0xf]
    %v2330 = vld [vmem:[#allocation6 + $0xe0] sm:$0xf]
    %v2331 = vld [vmem:[#allocation6 + $0xe4] sm:$0xf]
    %v2332 = vld [vmem:[#allocation6 + $0xe8] sm:$0xf]
    %v2333 = vld [vmem:[#allocation6 + $0xec] sm:$0xf]
    %v2334 = vld [vmem:[#allocation6 + $0xf0] sm:$0xf]
    %v2335 = vld [vmem:[#allocation6 + $0xf4] sm:$0xf]
    %v2336 = vld [vmem:[#allocation6 + $0xf8] sm:$0xf]
    %v2337 = vld [vmem:[#allocation6 + $0xfc] sm:$0xf]
    %v2338 = vld [vmem:[%s6] sm:$0x1]
    %v2340 = vlaneseq
    %v2341 = vshrl.u32 %v2340, 7
    %v2342 = vsub.s32 0, %v2341
    %v2343 = vrot.slane %v2338, %v2342
    %v2409 = vunpack.c.l.b16 %v2274
    %v2410 = vunpack.c.l.b16 %v2275
    %v2411 = vunpack.c.l.b16 %v2276
    %v2412 = vunpack.c.l.b16 %v2277
    %v2413 = vunpack.c.l.b16 %v2278
    %v2414 = vunpack.c.l.b16 %v2279
    %v2415 = vunpack.c.l.b16 %v2280
    %v2416 = vunpack.c.l.b16 %v2281
    %v2417 = vunpack.c.l.b16 %v2282
    %v2418 = vunpack.c.l.b16 %v2283
    %v2419 = vunpack.c.l.b16 %v2284
    %v2420 = vunpack.c.l.b16 %v2285
    %v2421 = vunpack.c.l.b16 %v2286
    %v2422 = vunpack.c.l.b16 %v2287
    %v2423 = vunpack.c.l.b16 %v2288
    %v2424 = vunpack.c.l.b16 %v2289
    %v2425 = vunpack.c.l.b16 %v2290
    %v2426 = vunpack.c.l.b16 %v2291
    %v2427 = vunpack.c.l.b16 %v2292
    %v2428 = vunpack.c.l.b16 %v2293
    %v2429 = vunpack.c.l.b16 %v2294
    %v2430 = vunpack.c.l.b16 %v2295
    %v2431 = vunpack.c.l.b16 %v2296
    %v2432 = vunpack.c.l.b16 %v2297
    %v2433 = vunpack.c.l.b16 %v2298
    %v2434 = vunpack.c.l.b16 %v2299
    %v2435 = vunpack.c.l.b16 %v2300
    %v2436 = vunpack.c.l.b16 %v2301
    %v2437 = vunpack.c.l.b16 %v2302
    %v2438 = vunpack.c.l.b16 %v2303
    %v2439 = vunpack.c.l.b16 %v2304
    %v2440 = vunpack.c.l.b16 %v2305
    %v2441 = vunpack.c.l.b16 %v2306
    %v2442 = vunpack.c.l.b16 %v2307
    %v2443 = vunpack.c.l.b16 %v2308
    %v2444 = vunpack.c.l.b16 %v2309
    %v2445 = vunpack.c.l.b16 %v2310
    %v2446 = vunpack.c.l.b16 %v2311
    %v2447 = vunpack.c.l.b16 %v2312
    %v2448 = vunpack.c.l.b16 %v2313
    %v2449 = vunpack.c.l.b16 %v2314
    %v2450 = vunpack.c.l.b16 %v2315
    %v2451 = vunpack.c.l.b16 %v2316
    %v2452 = vunpack.c.l.b16 %v2317
    %v2453 = vunpack.c.l.b16 %v2318
    %v2454 = vunpack.c.l.b16 %v2319
    %v2455 = vunpack.c.l.b16 %v2320
    %v2456 = vunpack.c.l.b16 %v2321
    %v2457 = vunpack.c.l.b16 %v2322
    %v2458 = vunpack.c.l.b16 %v2323
    %v2459 = vunpack.c.l.b16 %v2324
    %v2460 = vunpack.c.l.b16 %v2325
    %v2461 = vunpack.c.l.b16 %v2326
    %v2462 = vunpack.c.l.b16 %v2327
    %v2463 = vunpack.c.l.b16 %v2328
    %v2464 = vunpack.c.l.b16 %v2329
    %v2465 = vunpack.c.l.b16 %v2330
    %v2466 = vunpack.c.l.b16 %v2331
    %v2467 = vunpack.c.l.b16 %v2332
    %v2468 = vunpack.c.l.b16 %v2333
    %v2469 = vunpack.c.l.b16 %v2334
    %v2470 = vunpack.c.l.b16 %v2335
    %v2471 = vunpack.c.l.b16 %v2336
    %v2472 = vunpack.c.l.b16 %v2337
    %v2473 = vpack.c.b16 %v2410, %v2409
    %v2474 = vpack.c.b16 %v2412, %v2411
    %v2475 = vpack.c.b16 %v2414, %v2413
    %v2476 = vpack.c.b16 %v2416, %v2415
    %v2477 = vpack.c.b16 %v2418, %v2417
    %v2478 = vpack.c.b16 %v2420, %v2419
    %v2479 = vpack.c.b16 %v2422, %v2421
    %v2480 = vpack.c.b16 %v2424, %v2423
    %v2481 = vpack.c.b16 %v2426, %v2425
    %v2482 = vpack.c.b16 %v2428, %v2427
    %v2483 = vpack.c.b16 %v2430, %v2429
    %v2484 = vpack.c.b16 %v2432, %v2431
    %v2485 = vpack.c.b16 %v2434, %v2433
    %v2486 = vpack.c.b16 %v2436, %v2435
    %v2487 = vpack.c.b16 %v2438, %v2437
    %v2488 = vpack.c.b16 %v2440, %v2439
    %v2489 = vpack.c.b16 %v2442, %v2441
    %v2490 = vpack.c.b16 %v2444, %v2443
    %v2491 = vpack.c.b16 %v2446, %v2445
    %v2492 = vpack.c.b16 %v2448, %v2447
    %v2493 = vpack.c.b16 %v2450, %v2449
    %v2494 = vpack.c.b16 %v2452, %v2451
    %v2495 = vpack.c.b16 %v2454, %v2453
    %v2496 = vpack.c.b16 %v2456, %v2455
    %v2497 = vpack.c.b16 %v2458, %v2457
    %v2498 = vpack.c.b16 %v2460, %v2459
    %v2499 = vpack.c.b16 %v2462, %v2461
    %v2500 = vpack.c.b16 %v2464, %v2463
    %v2501 = vpack.c.b16 %v2466, %v2465
    %v2502 = vpack.c.b16 %v2468, %v2467
    %v2503 = vpack.c.b16 %v2470, %v2469
    %v2504 = vpack.c.b16 %v2472, %v2471
    %2537 = vmatprep.subr.bf16.mxu0 0
    %2538 = vmatpush1.bf16.msra.mxu0 %v2480
    %2539 = vmatprep.subr.bf16.mxu0 0
    %2540 = vmatpush1.bf16.msra.mxu0 %v2479
    %2541 = vmatprep.subr.bf16.mxu0 0
    %2542 = vmatpush1.bf16.msra.mxu0 %v2478
    %2543 = vmatprep.subr.bf16.mxu0 0
    %2544 = vmatpush1.bf16.msra.mxu0 %v2477
    %2545 = vmatprep.subr.bf16.mxu0 0
    %2546 = vmatpush1.bf16.msra.mxu0 %v2476
    %2547 = vmatprep.subr.bf16.mxu0 0
    %2548 = vmatpush1.bf16.msra.mxu0 %v2475
    %2549 = vmatprep.subr.bf16.mxu0 0
    %2550 = vmatpush1.bf16.msra.mxu0 %v2474
    %2551 = vmatprep.subr.bf16.mxu0 0
    %2552 = vmatpush1.bf16.msra.mxu0 %v2473
    %2553 = vmatprep.subr.bf16.mxu0 0
    %2554 = vmatpush2.bf16.msra.mxu0 %v2488
    %2555 = vmatprep.subr.bf16.mxu0 0
    %2556 = vmatpush2.bf16.msra.mxu0 %v2487
    %2557 = vmatprep.subr.bf16.mxu0 0
    %2558 = vmatpush2.bf16.msra.mxu0 %v2486
    %2559 = vmatprep.subr.bf16.mxu0 0
    %2560 = vmatpush2.bf16.msra.mxu0 %v2485
    %2561 = vmatprep.subr.bf16.mxu0 0
    %2562 = vmatpush2.bf16.msra.mxu0 %v2484
    %2563 = vmatprep.subr.bf16.mxu0 0
    %2564 = vmatpush2.bf16.msra.mxu0 %v2483
    %2565 = vmatprep.subr.bf16.mxu0 0
    %2566 = vmatpush2.bf16.msra.mxu0 %v2482
    %2567 = vmatprep.subr.bf16.mxu0 0
    %2568 = vmatpush2.bf16.msra.mxu0 %v2481
    %2569 = vmatprep.mubr.bf16.mxu0 %v2271
    %2570 = vmatmul.mubr.bf16.gmra.mxu0 %v2270
    %v2571 = vpop.f32.mrf.mxu0
    %v2572 = vadd.f32 %v2343, %v2571
    %v2573 = vpop.f32.mrf.mxu0
    %v2574 = vpop.f32.mrf.mxu0
    %v2575 = vadd.f32 %v2343, %v2574
    %v2576 = vpop.f32.mrf.mxu0
    %2577 = vdwg.mxu0
    %2578 = vmatprep.subr.bf16.mxu0 0
    %2579 = vmatpush1.bf16.msra.mxu0 %v2496
    %2580 = vmatprep.subr.bf16.mxu0 0
    %2581 = vmatpush1.bf16.msra.mxu0 %v2495
    %2582 = vmatprep.subr.bf16.mxu0 0
    %2583 = vmatpush1.bf16.msra.mxu0 %v2494
    %2584 = vmatprep.subr.bf16.mxu0 0
    %2585 = vmatpush1.bf16.msra.mxu0 %v2493
    %2586 = vmatprep.subr.bf16.mxu0 0
    %2587 = vmatpush1.bf16.msra.mxu0 %v2492
    %2588 = vmatprep.subr.bf16.mxu0 0
    %2589 = vmatpush1.bf16.msra.mxu0 %v2491
    %2590 = vmatprep.subr.bf16.mxu0 0
    %2591 = vmatpush1.bf16.msra.mxu0 %v2490
    %2592 = vmatprep.subr.bf16.mxu0 0
    %2593 = vmatpush1.bf16.msra.mxu0 %v2489
    %2594 = vmatprep.subr.bf16.mxu0 0
    %2595 = vmatpush2.bf16.msra.mxu0 %v2504
    %2596 = vmatprep.subr.bf16.mxu0 0
    %2597 = vmatpush2.bf16.msra.mxu0 %v2503
    %2598 = vmatprep.subr.bf16.mxu0 0
    %2599 = vmatpush2.bf16.msra.mxu0 %v2502
    %2600 = vmatprep.subr.bf16.mxu0 0
    %2601 = vmatpush2.bf16.msra.mxu0 %v2501
    %2602 = vmatprep.subr.bf16.mxu0 0
    %2603 = vmatpush2.bf16.msra.mxu0 %v2500
    %2604 = vmatprep.subr.bf16.mxu0 0
    %2605 = vmatpush2.bf16.msra.mxu0 %v2499
    %2606 = vmatprep.subr.bf16.mxu0 0
    %2607 = vmatpush2.bf16.msra.mxu0 %v2498
    %2608 = vmatprep.subr.bf16.mxu0 0
    %2609 = vmatpush2.bf16.msra.mxu0 %v2497
    %2610 = vmatprep.mubr.bf16.mxu0 %v2273
    %2611 = vmatmul.mubr.bf16.gmra.mxu0 %v2272
    %v2612 = vpop.f32.mrf.mxu0
    %v2613 = vadd.f32 %v2572, %v2612
    %v2614 = vpop.f32.mrf.mxu0
    %v2615 = vpop.f32.mrf.mxu0
    %v2616 = vadd.f32 %v2575, %v2615
    %v2617 = vpop.f32.mrf.mxu0
    %2618 = vdwg.mxu0
    %2619 = vst [vmem:[%s7] sm:$0xff] %v2613
    %2620 = vst [vmem:[%s7 + $0x8] sm:$0xff] %v2616
    // Predicated region
    $region42: #{actor_forward.1} parent=1 // pred_check
      _
    $region43: #{actor_forward.1} parent=1 // pred_check_branch
      %2622 = sbr.rel (0) target = $region45
    $region44: #{actor_forward.1} parent=1 // pred_region
      _
    $region45: #{actor_forward.1} parent=1 // pred_fallthru
      _
    // Predicated region
    $region46: #{actor_forward.1} parent=1 // pred_check
      _
    $region47: #{actor_forward.1} parent=1 // pred_check_branch
      %2624 = sbr.rel (0) target = $region49
    $region48: #{actor_forward.1} parent=1 // pred_region
      _
    $region49: #{actor_forward.1} parent=1 // pred_fallthru
      _
    %2625 = vsyncpa [#allocation3], 1
    %2626 = vsyncpa [#allocation5], 1

</llo_original>
